<compile_context>
chip_gen: v7x
topology: tpu7x:2x2x1
jax: 0.10.0
libtpu: 0.0.40
codegen_flags: <defaults>
</compile_context>

<pallas_src>
import functools
import math

import jax
import jax.numpy as jnp
import numpy as np
from jax import lax
from jax.experimental import pallas as pl
from jax.experimental.pallas import tpu as pltpu


def _round_up(x, m):
    return ((x + m - 1) // m) * m


def _stagenet_kernel(x_ref, wx_ref, wh_ref, b_ref, m2_ref, cum_ref, wcs_ref,
                     bsc_ref, wrs_ref, brs_ref, bcv_ref, dcol_ref,
                     out_ref,
                     c_sc, h_sc, tmph_sc, tmpd_sc, xz_sc, slab_sc,
                     *, Hp, H, L, K, T_CHUNK, B_TILE):
    ci = pl.program_id(1)                       # time-chunk index (innermost)

    @pl.when(ci == 0)
    def _init():                                # entering a new batch tile
        c_sc[...] = jnp.zeros_like(c_sc)
        h_sc[...] = jnp.zeros_like(h_sc)
        tmph_sc[...] = jnp.zeros_like(tmph_sc)
        tmpd_sc[...] = jnp.zeros_like(tmpd_sc)

    # Hoisted per-chunk input projection: one big-M matmul off the serial path.
    xz = jnp.dot(x_ref[...], wx_ref[...], preferred_element_type=jnp.float32)
    xz_sc[...] = xz + b_ref[...]                # (T_CHUNK*B_TILE, Gp) f32

    inv_H = 1.0 / H

    def softmax_lanes(v):                       # EUP reciprocal for the divide
        m = jnp.max(v, axis=-1, keepdims=True)
        e = jnp.exp(v - m)
        return e * pl.reciprocal(jnp.sum(e, axis=-1, keepdims=True), approx=True)

    def step(s, carry):
        c_last, hb_last, tmpd = carry
        t = ci * T_CHUNK + s                    # global timestep in this tile

        row = pl.multiple_of(s * B_TILE, B_TILE)
        z = xz_sc[pl.ds(row, B_TILE), :] + jnp.dot(
            hb_last, wh_ref[...], preferred_element_type=jnp.float32)   # (B_TILE, Gp)

        f_g = jax.nn.sigmoid(z[:, 0 * Hp:1 * Hp])
        i_g = jax.nn.sigmoid(z[:, 1 * Hp:2 * Hp])
        o_g = jax.nn.sigmoid(z[:, 2 * Hp:3 * Hp])
        c_in = jnp.tanh(z[:, 3 * Hp:4 * Hp])

        zm = z[:, 4 * Hp:4 * Hp + 2 * L]        # master-gate logits (B_TILE, 2L)
        sfi = jnp.concatenate([softmax_lanes(zm[:, :L]),
                               softmax_lanes(zm[:, L:])], axis=1)
        # cumax (l2r / r2l cumsum) + level->H expansion: ONE bf16 matmul against
        # the block-diagonal [mf 0; 0 mi] constant; padded H columns are zero.
        fm_im = jnp.dot(sfi.astype(jnp.bfloat16), m2_ref[...],
                        preferred_element_type=jnp.float32)             # (B_TILE, 2Hp)
        fm_full = fm_im[:, :Hp]
        im_full = fm_im[:, Hp:]

        ov = fm_full * im_full
        c_new = (ov * (f_g * c_last + i_g * c_in)
                 + (fm_full - ov) * c_last
                 + (im_full - ov) * c_in)
        h_new = o_g * jnp.tanh(c_new)
        hb_new = h_new.astype(jnp.bfloat16)

        # 1 - mean_l f_master == 1 - sum(fm_full)/H (padded columns are 0).
        cur_dist = 1.0 - jnp.sum(fm_full, axis=-1, keepdims=True) * inv_H

        # Circular hidden-state window: only the current slot is written.
        tmph_sc[lax.rem(t, K)] = h_new
        tmpd = jnp.concatenate([tmpd[:, 1:], cur_dist], axis=1)         # (B_TILE, K)

        # Local distance attention: softmax(cumsum) via upper-triangular matmul.
        cums = jnp.dot(tmpd.astype(jnp.bfloat16), cum_ref[...],
                       preferred_element_type=jnp.float32)
        local_dis = softmax_lanes(cums)                                 # (B_TILE, K)

        # Weighted window taps written straight into a persistent bf16 slab
        # (logical position p -> circular slot (t+1+p) mod K); no concat/cast
        # of the full slab.
        for p in range(K):
            hk = tmph_sc[lax.rem(t + 1 + p, K)] * local_dis[:, p:p + 1]
            slab_sc[:, p * Hp:(p + 1) * Hp] = hk.astype(jnp.bfloat16)

        # Fused conv (K taps) + theme-scale matmul: output = [conv | theme_pre].
        cs = jnp.dot(slab_sc[...], wcs_ref[...],
                     preferred_element_type=jnp.float32)                # (B_TILE, Hp+Sp)
        conv = cs[:, :Hp] + bcv_ref[...]
        theme = jnp.maximum(cs[:, Hp:] + bsc_ref[...], 0.0)
        theme = jnp.dot(theme.astype(jnp.bfloat16), wrs_ref[...],
                        preferred_element_type=jnp.float32) + brs_ref[...]
        theme = jax.nn.sigmoid(theme)

        # Residual output; cur_dist packed into spare lane column H (one-hot).
        out_ref[s] = (theme * conv + h_new
                      + cur_dist * dcol_ref[...]).astype(out_ref.dtype)
        return c_new, hb_new, tmpd

    carry0 = (c_sc[...], h_sc[...], tmpd_sc[...])
    c_f, hb_f, tmpd_f = lax.fori_loop(0, T_CHUNK, step, carry0)
    c_sc[...] = c_f
    h_sc[...] = hb_f
    tmpd_sc[...] = tmpd_f


def stagenet_forward(x, time, params, *, chunk_size, conv_size, levels,
                     t_chunk=32):
    B, T, D = x.shape
    H = chunk_size * levels
    L = levels
    K = conv_size
    S = H // 6

    # Lane-dense hidden width with at least one spare column (index H) used to
    # pack the per-step distance into the main lane-dense output block.
    Hp = _round_up(H + 1, 128)
    Sp = max(128, _round_up(S, 128))
    Mp = max(128, _round_up(2 * L, 128))
    Gp = 4 * Hp + Mp
    Daug = D + 1

    # Batch tiles: sublane-group sized; two tiles when possible so the v7x
    # second TensorCore gets work via the "parallel" grid axis.
    Bp = max(8, _round_up(B, 8))
    if Bp <= 8:
        B_TILE, n_btiles = Bp, 1
    else:
        B_TILE = _round_up((Bp + 1) // 2, 8)
        n_btiles = 2
        Bp = n_btiles * B_TILE

    # T_CHUNK amortizes the ~0.35us/grid-step overhead; 32-64 fits v5e/v6e VMEM
    # at these sizes.  TODO(synk): halve T_CHUNK and set vmem_limit_bytes
    # explicitly for production Hp on v7x (64 MiB VMEM, 32 MiB scoped default).
    T_CHUNK = max(1, min(t_chunk, T))
    num_chunks = (T + T_CHUNK - 1) // T_CHUNK
    Tp = num_chunks * T_CHUNK

    W1, b1 = params["kernel_w"], params["kernel_b"]            # (G, D+1), (G,)
    W2, b2 = params["rkernel_w"], params["rkernel_b"]          # (G, H+1), (G,)
    Wsc, bsc = params["scale_w"], params["scale_b"]            # (S, H), (S,)
    Wrs, brs = params["rescale_w"], params["rescale_b"]        # (H, S), (H,)
    Wcv, bcv = params["conv_w"], params["conv_b"]              # (H, H, K), (H,)

    def remap_g(a):
        """Reorder+pad the trailing G axis to [f|i|o|c_in|masters], Hp slabs."""
        out = jnp.zeros(a.shape[:-1] + (Gp,), jnp.float32)
        out = out.at[..., 0 * Hp:0 * Hp + H].set(a[..., 2 * L + 0 * H:2 * L + 1 * H])
        out = out.at[..., 1 * Hp:1 * Hp + H].set(a[..., 2 * L + 1 * H:2 * L + 2 * H])
        out = out.at[..., 2 * Hp:2 * Hp + H].set(a[..., 2 * L + 2 * H:2 * L + 3 * H])
        out = out.at[..., 3 * Hp:3 * Hp + H].set(a[..., 2 * L + 3 * H:2 * L + 4 * H])
        out = out.at[..., 4 * Hp:4 * Hp + 2 * L].set(a[..., 0:2 * L])
        return out

    # Fused input weights: x columns plus the interval column of BOTH linears.
    # (Interval kept on the bf16 x path: fine at the 2e-2 eval tolerance.)
    wx = jnp.concatenate([W1[:, :D].T, (W1[:, D] + W2[:, H])[None, :]], axis=0)
    wx = remap_g(wx).astype(jnp.bfloat16)                                # (Daug, Gp)
    wh = jnp.zeros((Hp, Gp), jnp.float32).at[:H].set(remap_g(W2[:, :H].T))
    wh = wh.astype(jnp.bfloat16)                                         # (Hp, Gp)
    bb = remap_g((b1 + b2)[None, :])                                     # (1, Gp) f32

    # Block-diagonal cumax-expansion constant [mf 0; 0 mi] (0/1 -> exact bf16).
    lvl = np.arange(Hp) // chunk_size
    valid = np.arange(Hp) < H
    jidx = np.arange(L)[:, None]
    m2 = np.zeros((2 * L, 2 * Hp), np.float32)
    m2[:L, :Hp] = ((lvl[None, :] >= jidx) & valid[None, :])
    m2[L:, Hp:] = ((lvl[None, :] <= jidx) & valid[None, :])
    m2 = jnp.asarray(m2, dtype=jnp.bfloat16)
    cumk = jnp.asarray(np.triu(np.ones((K, K), np.float32)), dtype=jnp.bfloat16)

    # Fused conv + theme-scale weight: [wcv | tile(wsc/K, K)], bf16.
    wcv = jnp.zeros((K, Hp, Hp), jnp.float32).at[:, :H, :H].set(
        jnp.transpose(Wcv, (2, 1, 0))).reshape(K * Hp, Hp)
    wsc = jnp.zeros((Hp, Sp), jnp.float32).at[:H, :S].set(Wsc.T * (1.0 / K))
    wcs = jnp.concatenate([wcv, jnp.tile(wsc, (K, 1))], axis=1).astype(jnp.bfloat16)

    bsc2 = jnp.zeros((1, Sp), jnp.float32).at[:, :S].set(bsc)
    wrs = jnp.zeros((Sp, Hp), jnp.float32).at[:S, :H].set(Wrs.T).astype(jnp.bfloat16)
    brs2 = jnp.zeros((1, Hp), jnp.float32).at[:, :H].set(brs)
    bcv2 = jnp.zeros((1, Hp), jnp.float32).at[:, :H].set(bcv)
    dcol = jnp.zeros((1, Hp), jnp.float32).at[:, H].set(1.0)   # one-hot column H

    # Augmented, padded input laid out as (chunk, batch-tile, step*B_TILE, Daug)
    # so the per-chunk projection matmul needs no in-kernel reshape.
    x_aug = jnp.concatenate([x, time[:, :, None]], axis=-1)              # (B, T, D+1)
    x_aug = jnp.pad(x_aug, ((0, Bp - B), (0, Tp - T), (0, 0)))
    x_merged = (x_aug.reshape(n_btiles, B_TILE, num_chunks, T_CHUNK, Daug)
                .transpose(2, 0, 3, 1, 4)
                .reshape(num_chunks, n_btiles, T_CHUNK * B_TILE, Daug)
                .astype(jnp.bfloat16))

    def full_spec(a):
        nd = a.ndim
        return pl.BlockSpec(a.shape, lambda b, i, _n=nd: (0,) * _n)

    kernel = functools.partial(_stagenet_kernel, Hp=Hp, H=H, L=L, K=K,
                               T_CHUNK=T_CHUNK, B_TILE=B_TILE)

    out_tbh = pl.pallas_call(
        kernel,
        out_shape=jax.ShapeDtypeStruct((Tp, Bp, Hp), jnp.float32),
        grid_spec=pltpu.PrefetchScalarGridSpec(
            num_scalar_prefetch=0,
            grid=(n_btiles, num_chunks),          # (parallel batch, serial time)
            in_specs=[
                pl.BlockSpec((None, None, T_CHUNK * B_TILE, Daug),
                             lambda b, i: (i, b, 0, 0)),
                full_spec(wx), full_spec(wh), full_spec(bb),
                full_spec(m2), full_spec(cumk), full_spec(wcs),
                full_spec(bsc2), full_spec(wrs), full_spec(brs2),
                full_spec(bcv2), full_spec(dcol),
            ],
            out_specs=pl.BlockSpec((T_CHUNK, B_TILE, Hp), lambda b, i: (i, b, 0)),
            scratch_shapes=[
                pltpu.VMEM((B_TILE, Hp), jnp.float32),            # c state
                pltpu.VMEM((B_TILE, Hp), jnp.bfloat16),           # h state (MXU in)
                pltpu.VMEM((K, B_TILE, Hp), jnp.float32),         # circular h window
                pltpu.VMEM((B_TILE, K), jnp.float32),             # distance window
                pltpu.VMEM((T_CHUNK * B_TILE, Gp), jnp.float32),  # hoisted x-proj
                pltpu.VMEM((B_TILE, K * Hp), jnp.bfloat16),       # weighted slab
            ]),
        compiler_params=pltpu.CompilerParams(
            dimension_semantics=("parallel", "arbitrary")),
    )(x_merged, wx, wh, bb, m2, cumk, wcs, bsc2, wrs, brs2, bcv2, dcol)

    output = jnp.transpose(out_tbh[:T, :B, :H], (1, 0, 2))               # (B, T, H)
    distance = out_tbh[:T, :B, H]                                        # (T, B)
    # TODO(synk): mask-aware get_last_visit; mask=None path takes the final step.
    last_output = output[:, -1, :]
    return last_output, output, distance


def ref_forward(x, time, params, *, chunk_size, conv_size, levels):
    """Pure-JAX reference replicating the PyTorch forward (eval mode)."""
    B, T, D = x.shape
    H = chunk_size * levels
    L = levels
    K = conv_size
    W1, b1 = params["kernel_w"], params["kernel_b"]
    W2, b2 = params["rkernel_w"], params["rkernel_b"]
    Wsc, bsc = params["scale_w"], params["scale_b"]
    Wrs, brs = params["rescale_w"], params["rescale_b"]
    Wcv, bcv = params["conv_w"], params["conv_b"]

    c = jnp.zeros((B, H)); h = jnp.zeros((B, H))
    tmp_h = jnp.zeros((K, B, H)); tmp_dis = jnp.zeros((K, B))
    hs, dists, origin = [], [], []
    for t in range(T):
        x_t = x[:, t, :]
        interval = time[:, t][:, None]
        xin = jnp.concatenate([x_t, interval], axis=-1)
        hin = jnp.concatenate([h, interval], axis=-1)
        z = xin @ W1.T + b1 + hin @ W2.T + b2
        fm = jnp.cumsum(jax.nn.softmax(z[:, :L], -1), -1)[:, :, None]
        zi = z[:, L:2 * L][:, ::-1]
        im = jnp.cumsum(jax.nn.softmax(zi, -1), -1)[:, ::-1][:, :, None]
        zr = z[:, 2 * L:].reshape(B, 4 * L, chunk_size)
        f_g = jax.nn.sigmoid(zr[:, :L]); i_g = jax.nn.sigmoid(zr[:, L:2 * L])
        o_g = jax.nn.sigmoid(zr[:, 2 * L:3 * L]); c_in = jnp.tanh(zr[:, 3 * L:])
        c_l = c.reshape(B, L, chunk_size)
        ov = fm * im
        c_new = ov * (f_g * c_l + i_g * c_in) + (fm - ov) * c_l + (im - ov) * c_in
        h_new = o_g * jnp.tanh(c_new)
        c = c_new.reshape(B, H); h = h_new.reshape(B, H)
        cur_dist = 1.0 - jnp.mean(fm[..., 0], -1)
        origin.append(h)
        tmp_h = jnp.concatenate([tmp_h[1:], h[None]], 0)
        tmp_dis = jnp.concatenate([tmp_dis[1:], cur_dist[None]], 0)
        dists.append(cur_dist)
        local_dis = jax.nn.softmax(jnp.cumsum(tmp_dis.T, 1), 1)
        local_h = jnp.transpose(tmp_h, (1, 2, 0)) * local_dis[:, None, :]
        theme = jnp.mean(local_h, -1)
        theme = jax.nn.sigmoid(jax.nn.relu(theme @ Wsc.T + bsc) @ Wrs.T + brs)
        conv = jnp.einsum('bck,ock->bo', local_h, Wcv) + bcv
        hs.append(theme * conv)
    origin = jnp.stack(origin, 1)
    rnn = jnp.stack(hs, 1) + origin
    dist = jnp.stack(dists, 0)
    return rnn[:, -1], rnn, dist


if __name__ == "__main__":
    # Small shapes; B=12 -> two 8-row batch tiles, T=12 with t_chunk=8 -> two
    # time chunks, so both the parallel-batch-tile and multi-chunk state paths
    # are exercised.
    B, T, D = 12, 12, 16
    chunk_size, conv_size, levels = 32, 4, 3
    H = chunk_size * levels
    G = 4 * H + 2 * levels

    key = jax.random.PRNGKey(0)
    k = jax.random.split(key, 12)
    lim1 = math.sqrt(6.0 / ((D + 1) + G))
    params = {
        "kernel_w": jax.random.uniform(k[0], (G, D + 1), jnp.float32, -lim1, lim1),
        "kernel_b": jnp.zeros((G,), jnp.float32),
        "rkernel_w": jax.nn.initializers.orthogonal()(k[1], (G, H + 1), jnp.float32),
        "rkernel_b": jnp.zeros((G,), jnp.float32),
        "scale_w": jax.random.uniform(k[2], (H // 6, H), jnp.float32,
                                      -1 / math.sqrt(H), 1 / math.sqrt(H)),
        "scale_b": jax.random.uniform(k[3], (H // 6,), jnp.float32,
                                      -1 / math.sqrt(H), 1 / math.sqrt(H)),
        "rescale_w": jax.random.uniform(k[4], (H, H // 6), jnp.float32,
                                        -1 / math.sqrt(H // 6), 1 / math.sqrt(H // 6)),
        "rescale_b": jax.random.uniform(k[5], (H,), jnp.float32,
                                        -1 / math.sqrt(H // 6), 1 / math.sqrt(H // 6)),
        "conv_w": jax.random.uniform(k[6], (H, H, conv_size), jnp.float32,
                                     -1 / math.sqrt(H * conv_size),
                                     1 / math.sqrt(H * conv_size)),
        "conv_b": jax.random.uniform(k[7], (H,), jnp.float32,
                                     -1 / math.sqrt(H * conv_size),
                                     1 / math.sqrt(H * conv_size)),
    }

    x = jax.random.normal(k[8], (B, T, D), jnp.float32)
    time = jax.random.uniform(k[9], (B, T), jnp.float32, 0.0, 2.0)

    last, out, dist = jax.block_until_ready(
        stagenet_forward(x, time, params, chunk_size=chunk_size,
                         conv_size=conv_size, levels=levels, t_chunk=8))

    with jax.default_matmul_precision("highest"):
        last_r, out_r, dist_r = ref_forward(x, time, params, chunk_size=chunk_size,
                                            conv_size=conv_size, levels=levels)

    np.testing.assert_allclose(np.asarray(out), np.asarray(out_r), rtol=2e-2, atol=2e-2)
    np.testing.assert_allclose(np.asarray(dist), np.asarray(dist_r), rtol=2e-2, atol=2e-2)
    np.testing.assert_allclose(np.asarray(last), np.asarray(last_r), rtol=2e-2, atol=2e-2)
    print("KERNEL_OK")
</pallas_src>

<mosaic_0001>
module attributes {stable_mosaic.version = 11 : i64} {
  func.func @_stagenet_kernel(%arg0: i32, %arg1: i32, %arg2: memref<1x1x64x17xbf16, #tpu.memory_space<vmem>>, %arg3: memref<17x640xbf16, #tpu.memory_space<vmem>>, %arg4: memref<128x640xbf16, #tpu.memory_space<vmem>>, %arg5: memref<1x640xf32, #tpu.memory_space<vmem>>, %arg6: memref<6x256xbf16, #tpu.memory_space<vmem>>, %arg7: memref<4x4xbf16, #tpu.memory_space<vmem>>, %arg8: memref<512x256xbf16, #tpu.memory_space<vmem>>, %arg9: memref<1x128xf32, #tpu.memory_space<vmem>>, %arg10: memref<128x128xbf16, #tpu.memory_space<vmem>>, %arg11: memref<1x128xf32, #tpu.memory_space<vmem>>, %arg12: memref<1x128xf32, #tpu.memory_space<vmem>>, %arg13: memref<1x128xf32, #tpu.memory_space<vmem>>, %arg14: memref<8x8x128xf32, #tpu.memory_space<vmem>>, %arg15: memref<8x128xf32, #tpu.memory_space<vmem>>, %arg16: memref<8x128xbf16, #tpu.memory_space<vmem>>, %arg17: memref<4x8x128xf32, #tpu.memory_space<vmem>>, %arg18: memref<8x4xf32, #tpu.memory_space<vmem>>, %arg19: memref<64x640xf32, #tpu.memory_space<vmem>>, %arg20: memref<8x512xbf16, #tpu.memory_space<vmem>>) attributes {dimension_semantics = [#tpu.dimension_semantics<parallel>, #tpu.dimension_semantics<arbitrary>], iteration_bounds = array<i64: 2, 2>, scalar_prefetch = 0 : i64, scratch_operands = 6 : i64, tpu.core_type = #tpu.core_type<tc>, window_params = [{transform_indices = @transform_0, window_bounds = array<i64: 1, 1, 64, 17>}, {pipeline_mode = #tpu.pipeline_mode<synchronous>, transform_indices = @transform_1, window_bounds = array<i64: 17, 640>}, {pipeline_mode = #tpu.pipeline_mode<synchronous>, transform_indices = @transform_2, window_bounds = array<i64: 128, 640>}, {pipeline_mode = #tpu.pipeline_mode<synchronous>, transform_indices = @transform_3, window_bounds = array<i64: 1, 640>}, {pipeline_mode = #tpu.pipeline_mode<synchronous>, transform_indices = @transform_4, window_bounds = array<i64: 6, 256>}, {pipeline_mode = #tpu.pipeline_mode<synchronous>, transform_indices = @transform_5, window_bounds = array<i64: 4, 4>}, {pipeline_mode = #tpu.pipeline_mode<synchronous>, transform_indices = @transform_6, window_bounds = array<i64: 512, 256>}, {pipeline_mode = #tpu.pipeline_mode<synchronous>, transform_indices = @transform_7, window_bounds = array<i64: 1, 128>}, {pipeline_mode = #tpu.pipeline_mode<synchronous>, transform_indices = @transform_8, window_bounds = array<i64: 128, 128>}, {pipeline_mode = #tpu.pipeline_mode<synchronous>, transform_indices = @transform_9, window_bounds = array<i64: 1, 128>}, {pipeline_mode = #tpu.pipeline_mode<synchronous>, transform_indices = @transform_10, window_bounds = array<i64: 1, 128>}, {pipeline_mode = #tpu.pipeline_mode<synchronous>, transform_indices = @transform_11, window_bounds = array<i64: 1, 128>}, {transform_indices = @transform_12, window_bounds = array<i64: 8, 8, 128>}]} {
    %c0_i32 = arith.constant 0 : i32
    %0 = arith.cmpi eq, %arg1, %c0_i32 : i32
    %1 = arith.extui %0 : i1 to i32
    %c0_i32_0 = arith.constant 0 : i32
    %2 = arith.cmpi ne, %1, %c0_i32_0 : i32
    scf.if %2 {
      %cst_24 = arith.constant 0.000000e+00 : f32
      %19 = vector.broadcast %cst_24 : f32 to vector<8x128xf32>
      %c0_25 = arith.constant 0 : index
      %c0_26 = arith.constant 0 : index
      %20 = vector.load %arg15[%c0_25, %c0_26] : memref<8x128xf32, #tpu.memory_space<vmem>>, vector<8x128xf32>
      tpu.vector_store %arg15[%c0_25, %c0_26], %19 {strides = array<i32>} : memref<8x128xf32, #tpu.memory_space<vmem>>, vector<8x128xf32>,
      %cst_27 = arith.constant 0.000000e+00 : bf16
      %21 = vector.broadcast %cst_27 : bf16 to vector<8x128xbf16>
      %c0_28 = arith.constant 0 : index
      %c0_29 = arith.constant 0 : index
      %22 = vector.load %arg16[%c0_28, %c0_29] : memref<8x128xbf16, #tpu.memory_space<vmem>>, vector<8x128xbf16>
      tpu.vector_store %arg16[%c0_28, %c0_29], %21 {strides = array<i32>} : memref<8x128xbf16, #tpu.memory_space<vmem>>, vector<8x128xbf16>,
      %cst_30 = arith.constant 0.000000e+00 : f32
      %23 = vector.broadcast %cst_30 : f32 to vector<4x8x128xf32>
      %c0_31 = arith.constant 0 : index
      %c0_32 = arith.constant 0 : index
      %c0_33 = arith.constant 0 : index
      %24 = vector.load %arg17[%c0_31, %c0_32, %c0_33] : memref<4x8x128xf32, #tpu.memory_space<vmem>>, vector<4x8x128xf32>
      tpu.vector_store %arg17[%c0_31, %c0_32, %c0_33], %23 {strides = array<i32>} : memref<4x8x128xf32, #tpu.memory_space<vmem>>, vector<4x8x128xf32>,
      %cst_34 = arith.constant 0.000000e+00 : f32
      %25 = vector.broadcast %cst_34 : f32 to vector<8x4xf32>
      %c0_35 = arith.constant 0 : index
      %c0_36 = arith.constant 0 : index
      %26 = vector.load %arg18[%c0_35, %c0_36] : memref<8x4xf32, #tpu.memory_space<vmem>>, vector<8x4xf32>
      tpu.vector_store %arg18[%c0_35, %c0_36], %25 {strides = array<i32>} : memref<8x4xf32, #tpu.memory_space<vmem>>, vector<8x4xf32>,
    } else {
    }
    %c0 = arith.constant 0 : index
    %c0_1 = arith.constant 0 : index
    %c0_2 = arith.constant 0 : index
    %c0_3 = arith.constant 0 : index
    %3 = vector.load %arg2[%c0, %c0_1, %c0_2, %c0_3] : memref<1x1x64x17xbf16, #tpu.memory_space<vmem>>, vector<1x1x64x17xbf16>
    %4 = vector.shape_cast %3 : vector<1x1x64x17xbf16> to vector<64x17xbf16>
    %c0_4 = arith.constant 0 : index
    %c0_5 = arith.constant 0 : index
    %5 = vector.load %arg3[%c0_4, %c0_5] : memref<17x640xbf16, #tpu.memory_space<vmem>>, vector<17x640xbf16>
    %cst = arith.constant dense<0.000000e+00> : vector<64x640xf32>
    %6 = tpu.matmul %4, %5, %cst {dimension_numbers = #tpu.dot_dimension_numbers<[1], [0], [0], [1], [0, 0, 1, 1], [], []>} : vector<64x17xbf16>, vector<17x640xbf16>, vector<64x640xf32> -> vector<64x640xf32>
    %c0_6 = arith.constant 0 : index
    %c0_7 = arith.constant 0 : index
    %7 = vector.load %arg5[%c0_6, %c0_7] : memref<1x640xf32, #tpu.memory_space<vmem>>, vector<1x640xf32>
    %8 = vector.broadcast %7 : vector<1x640xf32> to vector<64x640xf32>
    %9 = arith.addf %6, %8 : vector<64x640xf32>
    %c0_8 = arith.constant 0 : index
    %c0_9 = arith.constant 0 : index
    %10 = vector.load %arg19[%c0_8, %c0_9] : memref<64x640xf32, #tpu.memory_space<vmem>>, vector<64x640xf32>
    tpu.vector_store %arg19[%c0_8, %c0_9], %9 {strides = array<i32>} : memref<64x640xf32, #tpu.memory_space<vmem>>, vector<64x640xf32>,
    %c0_10 = arith.constant 0 : index
    %c0_11 = arith.constant 0 : index
    %11 = vector.load %arg15[%c0_10, %c0_11] : memref<8x128xf32, #tpu.memory_space<vmem>>, vector<8x128xf32>
    %c0_12 = arith.constant 0 : index
    %c0_13 = arith.constant 0 : index
    %12 = vector.load %arg16[%c0_12, %c0_13] : memref<8x128xbf16, #tpu.memory_space<vmem>>, vector<8x128xbf16>
    %c0_14 = arith.constant 0 : index
    %c0_15 = arith.constant 0 : index
    %13 = vector.load %arg18[%c0_14, %c0_15] : memref<8x4xf32, #tpu.memory_space<vmem>>, vector<8x4xf32>
    %c0_i32_16 = arith.constant 0 : i32
    %c8_i32 = arith.constant 8 : i32
    %14 = arith.addi %c0_i32_16, %c8_i32 : i32
    %c1_i32 = arith.constant 1 : i32
    %15:3 = scf.for %arg21 = %c0_i32_16 to %14 step %c1_i32 iter_args(%arg22 = %11, %arg23 = %12, %arg24 = %13) -> (vector<8x128xf32>, vector<8x128xbf16>, vector<8x4xf32>)  : i32 {
      %c8_i32_24 = arith.constant 8 : i32
      %19 = arith.muli %arg1, %c8_i32_24 : i32
      %20 = arith.addi %19, %arg21 : i32
      %c8_i32_25 = arith.constant 8 : i32
      %21 = arith.muli %arg21, %c8_i32_25 : i32
      %22 = tpu.assume_multiple %21, 8 : i32
      %23 = arith.index_cast %22 : i32 to index
      %c0_26 = arith.constant 0 : index
      %24 = vector.load %arg19[%23, %c0_26] : memref<64x640xf32, #tpu.memory_space<vmem>>, vector<8x640xf32>
      %c0_27 = arith.constant 0 : index
      %c0_28 = arith.constant 0 : index
      %25 = vector.load %arg4[%c0_27, %c0_28] : memref<128x640xbf16, #tpu.memory_space<vmem>>, vector<128x640xbf16>
      %cst_29 = arith.constant dense<0.000000e+00> : vector<8x640xf32>
      %26 = tpu.matmul %arg23, %25, %cst_29 {dimension_numbers = #tpu.dot_dimension_numbers<[1], [0], [0], [1], [0, 0, 1, 1], [], []>} : vector<8x128xbf16>, vector<128x640xbf16>, vector<8x640xf32> -> vector<8x640xf32>
      %27 = arith.addf %24, %26 : vector<8x640xf32>
      %28 = vector.extract_strided_slice %27 {offsets = [0, 0], sizes = [8, 128], strides = [1, 1]} : vector<8x640xf32> to vector<8x128xf32>
      %29 = arith.negf %28 : vector<8x128xf32>
      %30 = math.exp %29 : vector<8x128xf32>
      %cst_30 = arith.constant 1.000000e+00 : f32
      %31 = vector.broadcast %cst_30 : f32 to vector<8x128xf32>
      %32 = arith.addf %31, %30 : vector<8x128xf32>
      %33 = arith.divf %31, %32 : vector<8x128xf32>
      %34 = vector.extract_strided_slice %27 {offsets = [0, 128], sizes = [8, 128], strides = [1, 1]} : vector<8x640xf32> to vector<8x128xf32>
      %35 = arith.negf %34 : vector<8x128xf32>
      %36 = math.exp %35 : vector<8x128xf32>
      %cst_31 = arith.constant 1.000000e+00 : f32
      %37 = vector.broadcast %cst_31 : f32 to vector<8x128xf32>
      %38 = arith.addf %37, %36 : vector<8x128xf32>
      %39 = arith.divf %37, %38 : vector<8x128xf32>
      %40 = vector.extract_strided_slice %27 {offsets = [0, 256], sizes = [8, 128], strides = [1, 1]} : vector<8x640xf32> to vector<8x128xf32>
      %41 = arith.negf %40 : vector<8x128xf32>
      %42 = math.exp %41 : vector<8x128xf32>
      %cst_32 = arith.constant 1.000000e+00 : f32
      %43 = vector.broadcast %cst_32 : f32 to vector<8x128xf32>
      %44 = arith.addf %43, %42 : vector<8x128xf32>
      %45 = arith.divf %43, %44 : vector<8x128xf32>
      %46 = vector.extract_strided_slice %27 {offsets = [0, 384], sizes = [8, 128], strides = [1, 1]} : vector<8x640xf32> to vector<8x128xf32>
      %47 = math.tanh %46 : vector<8x128xf32>
      %48 = vector.extract_strided_slice %27 {offsets = [0, 512], sizes = [8, 6], strides = [1, 1]} : vector<8x640xf32> to vector<8x6xf32>
      %49 = vector.extract_strided_slice %48 {offsets = [0, 0], sizes = [8, 3], strides = [1, 1]} : vector<8x6xf32> to vector<8x3xf32>
      %cst_33 = arith.constant dense<0xFF800000> : vector<8xf32>
      %50 = vector.multi_reduction <maximumf>, %49, %cst_33 [1] : vector<8x3xf32> to vector<8xf32>
      %51 = vector.shape_cast %50 : vector<8xf32> to vector<8x1xf32>
      %52 = vector.broadcast %51 : vector<8x1xf32> to vector<8x3xf32>
      %53 = arith.subf %49, %52 : vector<8x3xf32>
      %54 = math.exp %53 : vector<8x3xf32>
      %cst_34 = arith.constant dense<0.000000e+00> : vector<8xf32>
      %55 = vector.multi_reduction <add>, %54, %cst_34 [1] : vector<8x3xf32> to vector<8xf32>
      %56 = vector.shape_cast %55 : vector<8xf32> to vector<8x1xf32>
      %57 = tpu.reciprocal %56 {approx = true} : vector<8x1xf32> -> vector<8x1xf32>
      %58 = vector.broadcast %57 : vector<8x1xf32> to vector<8x3xf32>
      %59 = arith.mulf %54, %58 : vector<8x3xf32>
      %60 = vector.extract_strided_slice %48 {offsets = [0, 3], sizes = [8, 3], strides = [1, 1]} : vector<8x6xf32> to vector<8x3xf32>
      %cst_35 = arith.constant dense<0xFF800000> : vector<8xf32>
      %61 = vector.multi_reduction <maximumf>, %60, %cst_35 [1] : vector<8x3xf32> to vector<8xf32>
      %62 = vector.shape_cast %61 : vector<8xf32> to vector<8x1xf32>
      %63 = vector.broadcast %62 : vector<8x1xf32> to vector<8x3xf32>
      %64 = arith.subf %60, %63 : vector<8x3xf32>
      %65 = math.exp %64 : vector<8x3xf32>
      %cst_36 = arith.constant dense<0.000000e+00> : vector<8xf32>
      %66 = vector.multi_reduction <add>, %65, %cst_36 [1] : vector<8x3xf32> to vector<8xf32>
      %67 = vector.shape_cast %66 : vector<8xf32> to vector<8x1xf32>
      %68 = tpu.reciprocal %67 {approx = true} : vector<8x1xf32> -> vector<8x1xf32>
      %69 = vector.broadcast %68 : vector<8x1xf32> to vector<8x3xf32>
      %70 = arith.mulf %65, %69 : vector<8x3xf32>
      %71 = tpu.concatenate %59, %70 in 1 : vector<8x3xf32>, vector<8x3xf32> -> vector<8x6xf32>
      %72 = arith.truncf %71 : vector<8x6xf32> to vector<8x6xbf16>
      %c0_37 = arith.constant 0 : index
      %c0_38 = arith.constant 0 : index
      %73 = vector.load %arg6[%c0_37, %c0_38] : memref<6x256xbf16, #tpu.memory_space<vmem>>, vector<6x256xbf16>
      %cst_39 = arith.constant dense<0.000000e+00> : vector<8x256xf32>
      %74 = tpu.matmul %72, %73, %cst_39 {dimension_numbers = #tpu.dot_dimension_numbers<[1], [0], [0], [1], [0, 0, 1, 1], [], []>} : vector<8x6xbf16>, vector<6x256xbf16>, vector<8x256xf32> -> vector<8x256xf32>
      %75 = vector.extract_strided_slice %74 {offsets = [0, 0], sizes = [8, 128], strides = [1, 1]} : vector<8x256xf32> to vector<8x128xf32>
      %76 = vector.extract_strided_slice %74 {offsets = [0, 128], sizes = [8, 128], strides = [1, 1]} : vector<8x256xf32> to vector<8x128xf32>
      %77 = arith.mulf %75, %76 : vector<8x128xf32>
      %78 = arith.mulf %33, %arg22 : vector<8x128xf32>
      %79 = arith.mulf %39, %47 : vector<8x128xf32>
      %80 = arith.addf %78, %79 : vector<8x128xf32>
      %81 = arith.mulf %77, %80 : vector<8x128xf32>
      %82 = arith.subf %75, %77 : vector<8x128xf32>
      %83 = arith.mulf %82, %arg22 : vector<8x128xf32>
      %84 = arith.addf %81, %83 : vector<8x128xf32>
      %85 = arith.subf %76, %77 : vector<8x128xf32>
      %86 = arith.mulf %85, %47 : vector<8x128xf32>
      %87 = arith.addf %84, %86 : vector<8x128xf32>
      %88 = math.tanh %87 : vector<8x128xf32>
      %89 = arith.mulf %45, %88 : vector<8x128xf32>
      %90 = arith.truncf %89 : vector<8x128xf32> to vector<8x128xbf16>
      %cst_40 = arith.constant dense<0.000000e+00> : vector<8xf32>
      %91 = vector.multi_reduction <add>, %75, %cst_40 [1] : vector<8x128xf32> to vector<8xf32>
      %92 = vector.shape_cast %91 : vector<8xf32> to vector<8x1xf32>
      %cst_41 = arith.constant 0.010416667 : f32
      %93 = vector.broadcast %cst_41 : f32 to vector<8x1xf32>
      %94 = arith.mulf %92, %93 : vector<8x1xf32>
      %cst_42 = arith.constant 1.000000e+00 : f32
      %95 = vector.broadcast %cst_42 : f32 to vector<8x1xf32>
      %96 = arith.subf %95, %94 : vector<8x1xf32>
      %c4_i32 = arith.constant 4 : i32
      %97 = arith.remsi %20, %c4_i32 : i32
      %98 = arith.index_cast %97 : i32 to index
      %c0_43 = arith.constant 0 : index
      %c0_44 = arith.constant 0 : index
      %99 = vector.load %arg17[%98, %c0_43, %c0_44] : memref<4x8x128xf32, #tpu.memory_space<vmem>>, vector<1x8x128xf32>
      %100 = vector.shape_cast %99 : vector<1x8x128xf32> to vector<8x128xf32>
      %101 = vector.shape_cast %89 : vector<8x128xf32> to vector<1x8x128xf32>
      tpu.vector_store %arg17[%98, %c0_43, %c0_44], %101 {strides = array<i32>} : memref<4x8x128xf32, #tpu.memory_space<vmem>>, vector<1x8x128xf32>,
      %102 = vector.extract_strided_slice %arg24 {offsets = [0, 1], sizes = [8, 3], strides = [1, 1]} : vector<8x4xf32> to vector<8x3xf32>
      %103 = tpu.concatenate %102, %96 in 1 : vector<8x3xf32>, vector<8x1xf32> -> vector<8x4xf32>
      %104 = arith.truncf %103 : vector<8x4xf32> to vector<8x4xbf16>
      %c0_45 = arith.constant 0 : index
      %c0_46 = arith.constant 0 : index
      %105 = vector.load %arg7[%c0_45, %c0_46] : memref<4x4xbf16, #tpu.memory_space<vmem>>, vector<4x4xbf16>
      %cst_47 = arith.constant dense<0.000000e+00> : vector<8x4xf32>
      %106 = tpu.matmul %104, %105, %cst_47 {dimension_numbers = #tpu.dot_dimension_numbers<[1], [0], [0], [1], [0, 0, 1, 1], [], []>} : vector<8x4xbf16>, vector<4x4xbf16>, vector<8x4xf32> -> vector<8x4xf32>
      %cst_48 = arith.constant dense<0xFF800000> : vector<8xf32>
      %107 = vector.multi_reduction <maximumf>, %106, %cst_48 [1] : vector<8x4xf32> to vector<8xf32>
      %108 = vector.shape_cast %107 : vector<8xf32> to vector<8x1xf32>
      %109 = vector.broadcast %108 : vector<8x1xf32> to vector<8x4xf32>
      %110 = arith.subf %106, %109 : vector<8x4xf32>
      %111 = math.exp %110 : vector<8x4xf32>
      %cst_49 = arith.constant dense<0.000000e+00> : vector<8xf32>
      %112 = vector.multi_reduction <add>, %111, %cst_49 [1] : vector<8x4xf32> to vector<8xf32>
      %113 = vector.shape_cast %112 : vector<8xf32> to vector<8x1xf32>
      %114 = tpu.reciprocal %113 {approx = true} : vector<8x1xf32> -> vector<8x1xf32>
      %115 = vector.broadcast %114 : vector<8x1xf32> to vector<8x4xf32>
      %116 = arith.mulf %111, %115 : vector<8x4xf32>
      %c1_i32_50 = arith.constant 1 : i32
      %117 = arith.addi %20, %c1_i32_50 : i32
      %c0_i32_51 = arith.constant 0 : i32
      %118 = arith.addi %117, %c0_i32_51 : i32
      %c4_i32_52 = arith.constant 4 : i32
      %119 = arith.remsi %118, %c4_i32_52 : i32
      %120 = arith.index_cast %119 : i32 to index
      %c0_53 = arith.constant 0 : index
      %c0_54 = arith.constant 0 : index
      %121 = vector.load %arg17[%120, %c0_53, %c0_54] : memref<4x8x128xf32, #tpu.memory_space<vmem>>, vector<1x8x128xf32>
      %122 = vector.shape_cast %121 : vector<1x8x128xf32> to vector<8x128xf32>
      %123 = vector.extract_strided_slice %116 {offsets = [0, 0], sizes = [8, 1], strides = [1, 1]} : vector<8x4xf32> to vector<8x1xf32>
      %124 = vector.broadcast %123 : vector<8x1xf32> to vector<8x128xf32>
      %125 = arith.mulf %122, %124 : vector<8x128xf32>
      %126 = arith.truncf %125 : vector<8x128xf32> to vector<8x128xbf16>
      %c0_55 = arith.constant 0 : index
      %c0_56 = arith.constant 0 : index
      %127 = vector.load %arg20[%c0_55, %c0_56] : memref<8x512xbf16, #tpu.memory_space<vmem>>, vector<8x128xbf16>
      tpu.vector_store %arg20[%c0_55, %c0_56], %126 {strides = array<i32>} : memref<8x512xbf16, #tpu.memory_space<vmem>>, vector<8x128xbf16>,
      %c1_i32_57 = arith.constant 1 : i32
      %128 = arith.addi %20, %c1_i32_57 : i32
      %c1_i32_58 = arith.constant 1 : i32
      %129 = arith.addi %128, %c1_i32_58 : i32
      %c4_i32_59 = arith.constant 4 : i32
      %130 = arith.remsi %129, %c4_i32_59 : i32
      %131 = arith.index_cast %130 : i32 to index
      %c0_60 = arith.constant 0 : index
      %c0_61 = arith.constant 0 : index
      %132 = vector.load %arg17[%131, %c0_60, %c0_61] : memref<4x8x128xf32, #tpu.memory_space<vmem>>, vector<1x8x128xf32>
      %133 = vector.shape_cast %132 : vector<1x8x128xf32> to vector<8x128xf32>
      %134 = vector.extract_strided_slice %116 {offsets = [0, 1], sizes = [8, 1], strides = [1, 1]} : vector<8x4xf32> to vector<8x1xf32>
      %135 = vector.broadcast %134 : vector<8x1xf32> to vector<8x128xf32>
      %136 = arith.mulf %133, %135 : vector<8x128xf32>
      %137 = arith.truncf %136 : vector<8x128xf32> to vector<8x128xbf16>
      %c0_62 = arith.constant 0 : index
      %c128 = arith.constant 128 : index
      %138 = vector.load %arg20[%c0_62, %c128] : memref<8x512xbf16, #tpu.memory_space<vmem>>, vector<8x128xbf16>
      tpu.vector_store %arg20[%c0_62, %c128], %137 {strides = array<i32>} : memref<8x512xbf16, #tpu.memory_space<vmem>>, vector<8x128xbf16>,
      %c1_i32_63 = arith.constant 1 : i32
      %139 = arith.addi %20, %c1_i32_63 : i32
      %c2_i32 = arith.constant 2 : i32
      %140 = arith.addi %139, %c2_i32 : i32
      %c4_i32_64 = arith.constant 4 : i32
      %141 = arith.remsi %140, %c4_i32_64 : i32
      %142 = arith.index_cast %141 : i32 to index
      %c0_65 = arith.constant 0 : index
      %c0_66 = arith.constant 0 : index
      %143 = vector.load %arg17[%142, %c0_65, %c0_66] : memref<4x8x128xf32, #tpu.memory_space<vmem>>, vector<1x8x128xf32>
      %144 = vector.shape_cast %143 : vector<1x8x128xf32> to vector<8x128xf32>
      %145 = vector.extract_strided_slice %116 {offsets = [0, 2], sizes = [8, 1], strides = [1, 1]} : vector<8x4xf32> to vector<8x1xf32>
      %146 = vector.broadcast %145 : vector<8x1xf32> to vector<8x128xf32>
      %147 = arith.mulf %144, %146 : vector<8x128xf32>
      %148 = arith.truncf %147 : vector<8x128xf32> to vector<8x128xbf16>
      %c0_67 = arith.constant 0 : index
      %c256 = arith.constant 256 : index
      %149 = vector.load %arg20[%c0_67, %c256] : memref<8x512xbf16, #tpu.memory_space<vmem>>, vector<8x128xbf16>
      tpu.vector_store %arg20[%c0_67, %c256], %148 {strides = array<i32>} : memref<8x512xbf16, #tpu.memory_space<vmem>>, vector<8x128xbf16>,
      %c1_i32_68 = arith.constant 1 : i32
      %150 = arith.addi %20, %c1_i32_68 : i32
      %c3_i32 = arith.constant 3 : i32
      %151 = arith.addi %150, %c3_i32 : i32
      %c4_i32_69 = arith.constant 4 : i32
      %152 = arith.remsi %151, %c4_i32_69 : i32
      %153 = arith.index_cast %152 : i32 to index
      %c0_70 = arith.constant 0 : index
      %c0_71 = arith.constant 0 : index
      %154 = vector.load %arg17[%153, %c0_70, %c0_71] : memref<4x8x128xf32, #tpu.memory_space<vmem>>, vector<1x8x128xf32>
      %155 = vector.shape_cast %154 : vector<1x8x128xf32> to vector<8x128xf32>
      %156 = vector.extract_strided_slice %116 {offsets = [0, 3], sizes = [8, 1], strides = [1, 1]} : vector<8x4xf32> to vector<8x1xf32>
      %157 = vector.broadcast %156 : vector<8x1xf32> to vector<8x128xf32>
      %158 = arith.mulf %155, %157 : vector<8x128xf32>
      %159 = arith.truncf %158 : vector<8x128xf32> to vector<8x128xbf16>
      %c0_72 = arith.constant 0 : index
      %c384 = arith.constant 384 : index
      %160 = vector.load %arg20[%c0_72, %c384] : memref<8x512xbf16, #tpu.memory_space<vmem>>, vector<8x128xbf16>
      tpu.vector_store %arg20[%c0_72, %c384], %159 {strides = array<i32>} : memref<8x512xbf16, #tpu.memory_space<vmem>>, vector<8x128xbf16>,
      %c0_73 = arith.constant 0 : index
      %c0_74 = arith.constant 0 : index
      %161 = vector.load %arg20[%c0_73, %c0_74] : memref<8x512xbf16, #tpu.memory_space<vmem>>, vector<8x512xbf16>
      %c0_75 = arith.constant 0 : index
      %c0_76 = arith.constant 0 : index
      %162 = vector.load %arg8[%c0_75, %c0_76] : memref<512x256xbf16, #tpu.memory_space<vmem>>, vector<512x256xbf16>
      %cst_77 = arith.constant dense<0.000000e+00> : vector<8x256xf32>
      %163 = tpu.matmul %161, %162, %cst_77 {dimension_numbers = #tpu.dot_dimension_numbers<[1], [0], [0], [1], [0, 0, 1, 1], [], []>} : vector<8x512xbf16>, vector<512x256xbf16>, vector<8x256xf32> -> vector<8x256xf32>
      %164 = vector.extract_strided_slice %163 {offsets = [0, 0], sizes = [8, 128], strides = [1, 1]} : vector<8x256xf32> to vector<8x128xf32>
      %c0_78 = arith.constant 0 : index
      %c0_79 = arith.constant 0 : index
      %165 = vector.load %arg12[%c0_78, %c0_79] : memref<1x128xf32, #tpu.memory_space<vmem>>, vector<1x128xf32>
      %166 = vector.broadcast %165 : vector<1x128xf32> to vector<8x128xf32>
      %167 = arith.addf %164, %166 : vector<8x128xf32>
      %168 = vector.extract_strided_slice %163 {offsets = [0, 128], sizes = [8, 128], strides = [1, 1]} : vector<8x256xf32> to vector<8x128xf32>
      %c0_80 = arith.constant 0 : index
      %c0_81 = arith.constant 0 : index
      %169 = vector.load %arg9[%c0_80, %c0_81] : memref<1x128xf32, #tpu.memory_space<vmem>>, vector<1x128xf32>
      %170 = vector.broadcast %169 : vector<1x128xf32> to vector<8x128xf32>
      %171 = arith.addf %168, %170 : vector<8x128xf32>
      %cst_82 = arith.constant 0.000000e+00 : f32
      %172 = vector.broadcast %cst_82 : f32 to vector<8x128xf32>
      %173 = arith.maximumf %171, %172 : vector<8x128xf32>
      %174 = arith.truncf %173 : vector<8x128xf32> to vector<8x128xbf16>
      %c0_83 = arith.constant 0 : index
      %c0_84 = arith.constant 0 : index
      %175 = vector.load %arg10[%c0_83, %c0_84] : memref<128x128xbf16, #tpu.memory_space<vmem>>, vector<128x128xbf16>
      %cst_85 = arith.constant dense<0.000000e+00> : vector<8x128xf32>
      %176 = tpu.matmul %174, %175, %cst_85 {dimension_numbers = #tpu.dot_dimension_numbers<[1], [0], [0], [1], [0, 0, 1, 1], [], []>} : vector<8x128xbf16>, vector<128x128xbf16>, vector<8x128xf32> -> vector<8x128xf32>
      %c0_86 = arith.constant 0 : index
      %c0_87 = arith.constant 0 : index
      %177 = vector.load %arg11[%c0_86, %c0_87] : memref<1x128xf32, #tpu.memory_space<vmem>>, vector<1x128xf32>
      %178 = vector.broadcast %177 : vector<1x128xf32> to vector<8x128xf32>
      %179 = arith.addf %176, %178 : vector<8x128xf32>
      %180 = arith.negf %179 : vector<8x128xf32>
      %181 = math.exp %180 : vector<8x128xf32>
      %cst_88 = arith.constant 1.000000e+00 : f32
      %182 = vector.broadcast %cst_88 : f32 to vector<8x128xf32>
      %183 = arith.addf %182, %181 : vector<8x128xf32>
      %184 = arith.divf %182, %183 : vector<8x128xf32>
      %185 = arith.mulf %184, %167 : vector<8x128xf32>
      %186 = arith.addf %185, %89 : vector<8x128xf32>
      %c0_89 = arith.constant 0 : index
      %c0_90 = arith.constant 0 : index
      %187 = vector.load %arg13[%c0_89, %c0_90] : memref<1x128xf32, #tpu.memory_space<vmem>>, vector<1x128xf32>
      %188 = vector.broadcast %96 : vector<8x1xf32> to vector<8x128xf32>
      %189 = vector.broadcast %187 : vector<1x128xf32> to vector<8x128xf32>
      %190 = arith.mulf %188, %189 : vector<8x128xf32>
      %191 = arith.addf %186, %190 : vector<8x128xf32>
      %192 = arith.index_cast %arg21 : i32 to index
      %c0_91 = arith.constant 0 : index
      %c0_92 = arith.constant 0 : index
      %193 = vector.load %arg14[%192, %c0_91, %c0_92] : memref<8x8x128xf32, #tpu.memory_space<vmem>>, vector<1x8x128xf32>
      %194 = vector.shape_cast %193 : vector<1x8x128xf32> to vector<8x128xf32>
      %195 = vector.shape_cast %191 : vector<8x128xf32> to vector<1x8x128xf32>
      tpu.vector_store %arg14[%192, %c0_91, %c0_92], %195 {strides = array<i32>} : memref<8x8x128xf32, #tpu.memory_space<vmem>>, vector<1x8x128xf32>,
      scf.yield %87, %90, %103 : vector<8x128xf32>, vector<8x128xbf16>, vector<8x4xf32>
    }
    %c8_i32_17 = arith.constant 8 : i32
    %c0_18 = arith.constant 0 : index
    %c0_19 = arith.constant 0 : index
    %16 = vector.load %arg15[%c0_18, %c0_19] : memref<8x128xf32, #tpu.memory_space<vmem>>, vector<8x128xf32>
    tpu.vector_store %arg15[%c0_18, %c0_19], %15#0 {strides = array<i32>} : memref<8x128xf32, #tpu.memory_space<vmem>>, vector<8x128xf32>,
    %c0_20 = arith.constant 0 : index
    %c0_21 = arith.constant 0 : index
    %17 = vector.load %arg16[%c0_20, %c0_21] : memref<8x128xbf16, #tpu.memory_space<vmem>>, vector<8x128xbf16>
    tpu.vector_store %arg16[%c0_20, %c0_21], %15#1 {strides = array<i32>} : memref<8x128xbf16, #tpu.memory_space<vmem>>, vector<8x128xbf16>,
    %c0_22 = arith.constant 0 : index
    %c0_23 = arith.constant 0 : index
    %18 = vector.load %arg18[%c0_22, %c0_23] : memref<8x4xf32, #tpu.memory_space<vmem>>, vector<8x4xf32>
    tpu.vector_store %arg18[%c0_22, %c0_23], %15#2 {strides = array<i32>} : memref<8x4xf32, #tpu.memory_space<vmem>>, vector<8x4xf32>,
    return
  }
  func.func @transform_0(%arg0: i32, %arg1: i32) -> (i32, i32, i32, i32) {
    %c0_i32 = arith.constant 0 : i32
    %c0_i32_0 = arith.constant 0 : i32
    %c0_i32_1 = arith.constant 0 : i32
    return %arg1, %arg0, %c0_i32, %c0_i32_0 : i32, i32, i32, i32
  }
  func.func @transform_1(%arg0: i32, %arg1: i32) -> (i32, i32) {
    %c0_i32 = arith.constant 0 : i32
    %c0_i32_0 = arith.constant 0 : i32
    %c0_i32_1 = arith.constant 0 : i32
    return %c0_i32, %c0_i32_0 : i32, i32
  }
  func.func @transform_2(%arg0: i32, %arg1: i32) -> (i32, i32) {
    %c0_i32 = arith.constant 0 : i32
    %c0_i32_0 = arith.constant 0 : i32
    %c0_i32_1 = arith.constant 0 : i32
    return %c0_i32, %c0_i32_0 : i32, i32
  }
  func.func @transform_3(%arg0: i32, %arg1: i32) -> (i32, i32) {
    %c0_i32 = arith.constant 0 : i32
    %c0_i32_0 = arith.constant 0 : i32
    %c0_i32_1 = arith.constant 0 : i32
    return %c0_i32, %c0_i32_0 : i32, i32
  }
  func.func @transform_4(%arg0: i32, %arg1: i32) -> (i32, i32) {
    %c0_i32 = arith.constant 0 : i32
    %c0_i32_0 = arith.constant 0 : i32
    %c0_i32_1 = arith.constant 0 : i32
    return %c0_i32, %c0_i32_0 : i32, i32
  }
  func.func @transform_5(%arg0: i32, %arg1: i32) -> (i32, i32) {
    %c0_i32 = arith.constant 0 : i32
    %c0_i32_0 = arith.constant 0 : i32
    %c0_i32_1 = arith.constant 0 : i32
    return %c0_i32, %c0_i32_0 : i32, i32
  }
  func.func @transform_6(%arg0: i32, %arg1: i32) -> (i32, i32) {
    %c0_i32 = arith.constant 0 : i32
    %c0_i32_0 = arith.constant 0 : i32
    %c0_i32_1 = arith.constant 0 : i32
    return %c0_i32, %c0_i32_0 : i32, i32
  }
  func.func @transform_7(%arg0: i32, %arg1: i32) -> (i32, i32) {
    %c0_i32 = arith.constant 0 : i32
    %c0_i32_0 = arith.constant 0 : i32
    %c0_i32_1 = arith.constant 0 : i32
    return %c0_i32, %c0_i32_0 : i32, i32
  }
  func.func @transform_8(%arg0: i32, %arg1: i32) -> (i32, i32) {
    %c0_i32 = arith.constant 0 : i32
    %c0_i32_0 = arith.constant 0 : i32
    %c0_i32_1 = arith.constant 0 : i32
    return %c0_i32, %c0_i32_0 : i32, i32
  }
  func.func @transform_9(%arg0: i32, %arg1: i32) -> (i32, i32) {
    %c0_i32 = arith.constant 0 : i32
    %c0_i32_0 = arith.constant 0 : i32
    %c0_i32_1 = arith.constant 0 : i32
    return %c0_i32, %c0_i32_0 : i32, i32
  }
  func.func @transform_10(%arg0: i32, %arg1: i32) -> (i32, i32) {
    %c0_i32 = arith.constant 0 : i32
    %c0_i32_0 = arith.constant 0 : i32
    %c0_i32_1 = arith.constant 0 : i32
    return %c0_i32, %c0_i32_0 : i32, i32
  }
  func.func @transform_11(%arg0: i32, %arg1: i32) -> (i32, i32) {
    %c0_i32 = arith.constant 0 : i32
    %c0_i32_0 = arith.constant 0 : i32
    %c0_i32_1 = arith.constant 0 : i32
    return %c0_i32, %c0_i32_0 : i32, i32
  }
  func.func @transform_12(%arg0: i32, %arg1: i32) -> (i32, i32, i32) {
    %c0_i32 = arith.constant 0 : i32
    %c0_i32_0 = arith.constant 0 : i32
    return %arg1, %arg0, %c0_i32 : i32, i32, i32
  }
}

</mosaic_0001>

<llo_original>
// kernel: tpu_custom_call.1
$region0: #{tpu_custom_call.1}
  #allocation0 [shape = 'u32[]', space=smem, size = 0x4, offset = 0x4, fixed_abs, tag = 'smem constant byte address 0x4 - core index']
  #allocation1 [shape = 'u32[144,128]{1,0:T(1,128)}', space=vmem, size = 0x12000, scoped, tag = 'internal scratch']
  #allocation2 [shape = 'f32[8,128]{1,0:T(8,128)}', space=vmem, size = 0x1000, scoped, tag = 'scratch operand']
  #allocation3 [shape = 'bf16[8,128]{1,0:T(8,128)(2,1)}', space=vmem, size = 0x800, scoped, tag = 'scratch operand']
  #allocation4 [shape = 'f32[4,8,128]{2,1,0:T(8,128)}', space=vmem, size = 0x4000, scoped, tag = 'scratch operand']
  #allocation5 [shape = 'f32[8,4]{1,0:T(8,128)}', space=vmem, size = 0x1000, scoped, tag = 'scratch operand']
  #allocation6 [shape = 'f32[64,640]{1,0:T(8,128)}', space=vmem, size = 0x28000, scoped, tag = 'scratch operand']
  #allocation7 [shape = 'bf16[8,512]{1,0:T(8,128)(2,1)}', space=vmem, size = 0x2000, scoped, tag = 'scratch operand']
  %s0 = inlined_call_operand.vmem [shape: bf16[2,2,64,17], index: 0, kind: input, shape index: {}]
  %s1 = inlined_call_operand.vmem [shape: bf16[17,640], index: 1, kind: input, shape index: {}]
  %s2 = inlined_call_operand.hbm [shape: bf16[128,640], index: 2, kind: input, shape index: {}]
  %s3 = inlined_call_operand.vmem [shape: f32[1,640], index: 3, kind: input, shape index: {}]
  %s4 = inlined_call_operand.vmem [shape: bf16[6,256], index: 4, kind: input, shape index: {}]
  %s5 = inlined_call_operand.vmem [shape: bf16[4,4], index: 5, kind: input, shape index: {}]
  %s6 = inlined_call_operand.hbm [shape: bf16[512,256], index: 6, kind: input, shape index: {}]
  %s7 = inlined_call_operand.vmem [shape: f32[1,128], index: 7, kind: input, shape index: {}]
  %s8 = inlined_call_operand.vmem [shape: bf16[128,128], index: 8, kind: input, shape index: {}]
  %s9 = inlined_call_operand.vmem [shape: f32[1,128], index: 9, kind: input, shape index: {}]
  %s10 = inlined_call_operand.vmem [shape: f32[1,128], index: 10, kind: input, shape index: {}]
  %s11 = inlined_call_operand.vmem [shape: f32[1,128], index: 11, kind: input, shape index: {}]
  %s12 = inlined_call_operand.hbm [shape: f32[16,16,128], index: 12, kind: output, shape index: {}]
  %s13 = sld [smem:[#allocation0]]
  $region100: #{tpu_custom_call.1} parent=0
    _
  %s15 = ssub.s32 1, %s13
  %s16 = scalar_select 0, %s15, %s13
  $region1: #{tpu_custom_call.1} parent=0
    #allocation8 [shape = 'u8[163840]{0}', space=vmem, size = 0x28000, scoped, tag = 'input window, operand 2, single buffered']
    #allocation9 [shape = 's32[2]{0}', space=sflag, size = 0x8, scoped, tag = 'scoped memory for tpu_custom_call.1']
    #allocation10 [shape = 's32[2]{0}', space=sflag, size = 0x8, scoped, tag = 'scoped memory for tpu_custom_call.1']
    #allocation11 [shape = 'u8[262144]{0}', space=vmem, size = 0x40000, scoped, tag = 'input window, operand 6, single buffered']
    #allocation12 [shape = 's32[1]{0}', space=sflag, size = 0x4, scoped, tag = 'scoped memory for tpu_custom_call.1']
    #allocation13 [shape = 'u8[65536]{0}', space=vmem, size = 0x10000, scoped, tag = 'output window, operand 0']
    %17 = vsyncpa [#allocation9], 0
    %18 = vsyncpa [#allocation12], 0
    %19 = vsyncpa [#allocation10], 0
    %s20 = scalar_lea.sflag [#allocation10], 1
    %21 = vsyncpa %s20, 0
    loop: start=0, step=1, limit=6
    $region2: #{tpu_custom_call.1} parent=1 // loop_pre_header
      _
    $region3: #{tpu_custom_call.1} parent=1 // loop_header
      %s23 = sphi 0, %s27
      %p24 = scmp.ge.s32.totalorder %s23, 6
      %s30 = sphi 0, %s42
      %s31 = sphi 0, %s38
      %s32 = sphi 0, %s30
      %s33 = sphi 0, %s31
      %s34 = sphi 0, %s32
      %s35 = sphi 0, %s33
      %s47 = sphi 0, %s49
      %s50 = sphi 0, %s47
      %s51 = sphi 0, %s50
      %s67 = sphi 0, %s51
      %s71 = sphi 0, %s71
      %s73 = sphi 0, %s71
      %s74 = sphi 0, %s73
      %s88 = sphi 0, %s74
      %s92 = sphi 0, %s92
      %s94 = sphi 0, %s92
      %s95 = sphi 0, %s94
      %s109 = sphi 0, %s95
      %s113 = sphi 0, %s113
      %s115 = sphi 0, %s113
      %s116 = sphi 0, %s115
      %s130 = sphi 0, %s116
      %s134 = sphi 0, %s134
      %s136 = sphi 0, %s134
      %s137 = sphi 0, %s136
      %s151 = sphi 0, %s137
      %s155 = sphi 0, %s155
      %s157 = sphi 0, %s155
      %s158 = sphi 0, %s157
      %s172 = sphi 0, %s158
      %s176 = sphi 0, %s176
      %s178 = sphi 0, %s176
      %s179 = sphi 0, %s178
      %s193 = sphi 0, %s179
      %s197 = sphi 0, %s197
      %s199 = sphi 0, %s197
      %s200 = sphi 0, %s199
      %s214 = sphi 0, %s200
      %s218 = sphi 0, %s218
      %s220 = sphi 0, %s218
      %s221 = sphi 0, %s220
      %s235 = sphi 0, %s221
      %s239 = sphi 0, %s239
      %s241 = sphi 0, %s239
      %s242 = sphi 0, %s241
      %s256 = sphi 0, %s242
      %s260 = sphi 0, %s260
      %s262 = sphi 0, %s260
      %s263 = sphi 0, %s262
      %s277 = sphi 0, %s263
      %s281 = sphi 0, %s281
      %s283 = sphi 0, %s281
      %s284 = sphi 0, %s283
      %s298 = sphi 0, %s284
      %s306 = sphi 0, %s308
      %s309 = sphi 0, %s306
      %s310 = sphi 0, %s309
      %s326 = sphi 0, %s310
    $region4: #{tpu_custom_call.1} parent=1 // loop_header_branch
      %26 = sbr.rel (%p24) target = $region8
    $region5: #{tpu_custom_call.1} parent=1 // loop_body
      %s28 = ssub.s32 %s23, 1
      %s29 = ssub.s32 %s23, 2
      %s36 = sadd.s32 1, %s31
      %p37 = scmp.ge.s32.totalorder %s36, 2
      %s38 = scalar_select %p37, 0, %s36
      %s39 = sadd.s32 1, %s30
      %s40 = scalar_select %p37, %s39, %s30
      %p41 = scmp.ge.s32.totalorder %s40, 2
      %s42 = scalar_select %p41, 0, %s40
      %s43 = ssub.s32 %s31, %s38
      %s44 = ssub.s32 %s30, %s42
      %s45 = sor.u32 %s43, %s44
      %p46 = scmp.eq.s32.totalorder %s45, 0
      %s48 = sadd.s32 %s47, 1
      %s49 = scalar_select %p46, %s47, %s48
      %p52 = pneg %p46
      %p53 = scmp.eq.s32.totalorder %s23, 3
      %p54 = por %p52, %p53
      %p55 = scmp.ne.s32.totalorder %s47, %s50
      %p56 = scmp.eq.s32.totalorder %s23, 0
      %p57 = por %p55, %p56
      %p58 = scmp.ne.s32.totalorder %s47, %s50
      %p59 = scmp.eq.s32.totalorder %s28, 3
      %p60 = por %p58, %p59
      %p61 = scmp.ne.s32.totalorder %s50, %s51
      %p62 = scmp.eq.s32.totalorder %s28, 0
      %p63 = por %p61, %p62
      %p64 = scmp.ne.s32.totalorder %s50, %s51
      %p65 = scmp.eq.s32.totalorder %s29, 3
      %p66 = por %p64, %p65
      %p68 = scmp.ne.s32.totalorder %s51, %s67
      %p69 = scmp.eq.s32.totalorder %s29, 0
      %p70 = por %p68, %p69
      %s72 = sadd.s32 %s71, 1
      %p75 = scmp.eq.s32.totalorder %s23, 3
      %p76 = scmp.ne.s32.totalorder %s71, %s73
      %p77 = scmp.eq.s32.totalorder %s23, 0
      %p78 = por %p76, %p77
      %p79 = scmp.ne.s32.totalorder %s71, %s73
      %p80 = scmp.eq.s32.totalorder %s28, 3
      %p81 = por %p79, %p80
      %p82 = scmp.ne.s32.totalorder %s73, %s74
      %p83 = scmp.eq.s32.totalorder %s28, 0
      %p84 = por %p82, %p83
      %p85 = scmp.ne.s32.totalorder %s73, %s74
      %p86 = scmp.eq.s32.totalorder %s29, 3
      %p87 = por %p85, %p86
      %p89 = scmp.ne.s32.totalorder %s74, %s88
      %p90 = scmp.eq.s32.totalorder %s29, 0
      %p91 = por %p89, %p90
      %s93 = sadd.s32 %s92, 1
      %p96 = scmp.eq.s32.totalorder %s23, 3
      %p97 = scmp.ne.s32.totalorder %s92, %s94
      %p98 = scmp.eq.s32.totalorder %s23, 0
      %p99 = por %p97, %p98
      %p100 = scmp.ne.s32.totalorder %s92, %s94
      %p101 = scmp.eq.s32.totalorder %s28, 3
      %p102 = por %p100, %p101
      %p103 = scmp.ne.s32.totalorder %s94, %s95
      %p104 = scmp.eq.s32.totalorder %s28, 0
      %p105 = por %p103, %p104
      %p106 = scmp.ne.s32.totalorder %s94, %s95
      %p107 = scmp.eq.s32.totalorder %s29, 3
      %p108 = por %p106, %p107
      %p110 = scmp.ne.s32.totalorder %s95, %s109
      %p111 = scmp.eq.s32.totalorder %s29, 0
      %p112 = por %p110, %p111
      %s114 = sadd.s32 %s113, 1
      %p117 = scmp.eq.s32.totalorder %s23, 3
      %p118 = scmp.ne.s32.totalorder %s113, %s115
      %p119 = scmp.eq.s32.totalorder %s23, 0
      %p120 = por %p118, %p119
      %p121 = scmp.ne.s32.totalorder %s113, %s115
      %p122 = scmp.eq.s32.totalorder %s28, 3
      %p123 = por %p121, %p122
      %p124 = scmp.ne.s32.totalorder %s115, %s116
      %p125 = scmp.eq.s32.totalorder %s28, 0
      %p126 = por %p124, %p125
      %p127 = scmp.ne.s32.totalorder %s115, %s116
      %p128 = scmp.eq.s32.totalorder %s29, 3
      %p129 = por %p127, %p128
      %p131 = scmp.ne.s32.totalorder %s116, %s130
      %p132 = scmp.eq.s32.totalorder %s29, 0
      %p133 = por %p131, %p132
      %s135 = sadd.s32 %s134, 1
      %p138 = scmp.eq.s32.totalorder %s23, 3
      %p139 = scmp.ne.s32.totalorder %s134, %s136
      %p140 = scmp.eq.s32.totalorder %s23, 0
      %p141 = por %p139, %p140
      %p142 = scmp.ne.s32.totalorder %s134, %s136
      %p143 = scmp.eq.s32.totalorder %s28, 3
      %p144 = por %p142, %p143
      %p145 = scmp.ne.s32.totalorder %s136, %s137
      %p146 = scmp.eq.s32.totalorder %s28, 0
      %p147 = por %p145, %p146
      %p148 = scmp.ne.s32.totalorder %s136, %s137
      %p149 = scmp.eq.s32.totalorder %s29, 3
      %p150 = por %p148, %p149
      %p152 = scmp.ne.s32.totalorder %s137, %s151
      %p153 = scmp.eq.s32.totalorder %s29, 0
      %p154 = por %p152, %p153
      %s156 = sadd.s32 %s155, 1
      %p159 = scmp.eq.s32.totalorder %s23, 3
      %p160 = scmp.ne.s32.totalorder %s155, %s157
      %p161 = scmp.eq.s32.totalorder %s23, 0
      %p162 = por %p160, %p161
      %p163 = scmp.ne.s32.totalorder %s155, %s157
      %p164 = scmp.eq.s32.totalorder %s28, 3
      %p165 = por %p163, %p164
      %p166 = scmp.ne.s32.totalorder %s157, %s158
      %p167 = scmp.eq.s32.totalorder %s28, 0
      %p168 = por %p166, %p167
      %p169 = scmp.ne.s32.totalorder %s157, %s158
      %p170 = scmp.eq.s32.totalorder %s29, 3
      %p171 = por %p169, %p170
      %p173 = scmp.ne.s32.totalorder %s158, %s172
      %p174 = scmp.eq.s32.totalorder %s29, 0
      %p175 = por %p173, %p174
      %s177 = sadd.s32 %s176, 1
      %p180 = scmp.eq.s32.totalorder %s23, 3
      %p181 = scmp.ne.s32.totalorder %s176, %s178
      %p182 = scmp.eq.s32.totalorder %s23, 0
      %p183 = por %p181, %p182
      %p184 = scmp.ne.s32.totalorder %s176, %s178
      %p185 = scmp.eq.s32.totalorder %s28, 3
      %p186 = por %p184, %p185
      %p187 = scmp.ne.s32.totalorder %s178, %s179
      %p188 = scmp.eq.s32.totalorder %s28, 0
      %p189 = por %p187, %p188
      %p190 = scmp.ne.s32.totalorder %s178, %s179
      %p191 = scmp.eq.s32.totalorder %s29, 3
      %p192 = por %p190, %p191
      %p194 = scmp.ne.s32.totalorder %s179, %s193
      %p195 = scmp.eq.s32.totalorder %s29, 0
      %p196 = por %p194, %p195
      %s198 = sadd.s32 %s197, 1
      %p201 = scmp.eq.s32.totalorder %s23, 3
      %p202 = scmp.ne.s32.totalorder %s197, %s199
      %p203 = scmp.eq.s32.totalorder %s23, 0
      %p204 = por %p202, %p203
      %p205 = scmp.ne.s32.totalorder %s197, %s199
      %p206 = scmp.eq.s32.totalorder %s28, 3
      %p207 = por %p205, %p206
      %p208 = scmp.ne.s32.totalorder %s199, %s200
      %p209 = scmp.eq.s32.totalorder %s28, 0
      %p210 = por %p208, %p209
      %p211 = scmp.ne.s32.totalorder %s199, %s200
      %p212 = scmp.eq.s32.totalorder %s29, 3
      %p213 = por %p211, %p212
      %p215 = scmp.ne.s32.totalorder %s200, %s214
      %p216 = scmp.eq.s32.totalorder %s29, 0
      %p217 = por %p215, %p216
      %s219 = sadd.s32 %s218, 1
      %p222 = scmp.eq.s32.totalorder %s23, 3
      %p223 = scmp.ne.s32.totalorder %s218, %s220
      %p224 = scmp.eq.s32.totalorder %s23, 0
      %p225 = por %p223, %p224
      %p226 = scmp.ne.s32.totalorder %s218, %s220
      %p227 = scmp.eq.s32.totalorder %s28, 3
      %p228 = por %p226, %p227
      %p229 = scmp.ne.s32.totalorder %s220, %s221
      %p230 = scmp.eq.s32.totalorder %s28, 0
      %p231 = por %p229, %p230
      %p232 = scmp.ne.s32.totalorder %s220, %s221
      %p233 = scmp.eq.s32.totalorder %s29, 3
      %p234 = por %p232, %p233
      %p236 = scmp.ne.s32.totalorder %s221, %s235
      %p237 = scmp.eq.s32.totalorder %s29, 0
      %p238 = por %p236, %p237
      %s240 = sadd.s32 %s239, 1
      %p243 = scmp.eq.s32.totalorder %s23, 3
      %p244 = scmp.ne.s32.totalorder %s239, %s241
      %p245 = scmp.eq.s32.totalorder %s23, 0
      %p246 = por %p244, %p245
      %p247 = scmp.ne.s32.totalorder %s239, %s241
      %p248 = scmp.eq.s32.totalorder %s28, 3
      %p249 = por %p247, %p248
      %p250 = scmp.ne.s32.totalorder %s241, %s242
      %p251 = scmp.eq.s32.totalorder %s28, 0
      %p252 = por %p250, %p251
      %p253 = scmp.ne.s32.totalorder %s241, %s242
      %p254 = scmp.eq.s32.totalorder %s29, 3
      %p255 = por %p253, %p254
      %p257 = scmp.ne.s32.totalorder %s242, %s256
      %p258 = scmp.eq.s32.totalorder %s29, 0
      %p259 = por %p257, %p258
      %s261 = sadd.s32 %s260, 1
      %p264 = scmp.eq.s32.totalorder %s23, 3
      %p265 = scmp.ne.s32.totalorder %s260, %s262
      %p266 = scmp.eq.s32.totalorder %s23, 0
      %p267 = por %p265, %p266
      %p268 = scmp.ne.s32.totalorder %s260, %s262
      %p269 = scmp.eq.s32.totalorder %s28, 3
      %p270 = por %p268, %p269
      %p271 = scmp.ne.s32.totalorder %s262, %s263
      %p272 = scmp.eq.s32.totalorder %s28, 0
      %p273 = por %p271, %p272
      %p274 = scmp.ne.s32.totalorder %s262, %s263
      %p275 = scmp.eq.s32.totalorder %s29, 3
      %p276 = por %p274, %p275
      %p278 = scmp.ne.s32.totalorder %s263, %s277
      %p279 = scmp.eq.s32.totalorder %s29, 0
      %p280 = por %p278, %p279
      %s282 = sadd.s32 %s281, 1
      %p285 = scmp.eq.s32.totalorder %s23, 3
      %p286 = scmp.ne.s32.totalorder %s281, %s283
      %p287 = scmp.eq.s32.totalorder %s23, 0
      %p288 = por %p286, %p287
      %p289 = scmp.ne.s32.totalorder %s281, %s283
      %p290 = scmp.eq.s32.totalorder %s28, 3
      %p291 = por %p289, %p290
      %p292 = scmp.ne.s32.totalorder %s283, %s284
      %p293 = scmp.eq.s32.totalorder %s28, 0
      %p294 = por %p292, %p293
      %p295 = scmp.ne.s32.totalorder %s283, %s284
      %p296 = scmp.eq.s32.totalorder %s29, 3
      %p297 = por %p295, %p296
      %p299 = scmp.ne.s32.totalorder %s284, %s298
      %p300 = scmp.eq.s32.totalorder %s29, 0
      %p301 = por %p299, %p300
      %s302 = ssub.s32 %s31, %s38
      %s303 = ssub.s32 %s30, %s42
      %s304 = sor.u32 %s302, %s303
      %p305 = scmp.eq.s32.totalorder %s304, 0
      %s307 = sadd.s32 %s306, 1
      %s308 = scalar_select %p305, %s306, %s307
      %p311 = pneg %p305
      %p312 = scmp.eq.s32.totalorder %s23, 3
      %p313 = por %p311, %p312
      %p314 = scmp.ne.s32.totalorder %s306, %s309
      %p315 = scmp.eq.s32.totalorder %s23, 0
      %p316 = por %p314, %p315
      %p317 = scmp.ne.s32.totalorder %s306, %s309
      %p318 = scmp.eq.s32.totalorder %s28, 3
      %p319 = por %p317, %p318
      %p320 = scmp.ne.s32.totalorder %s309, %s310
      %p321 = scmp.eq.s32.totalorder %s28, 0
      %p322 = por %p320, %p321
      %p323 = scmp.ne.s32.totalorder %s309, %s310
      %p324 = scmp.eq.s32.totalorder %s29, 3
      %p325 = por %p323, %p324
      %p327 = scmp.ne.s32.totalorder %s310, %s326
      %p328 = scmp.eq.s32.totalorder %s29, 0
      %p329 = por %p327, %p328
      %p330 = scmp.le.s32.totalorder 1, %s23
      %p331 = scmp.lt.s32.totalorder %s23, 5
      %p332 = pnand %p330, %p331
      %p333 = pneg %p332
      // Predicated region
      $region9: #{tpu_custom_call.1} parent=5 // pred_check
        _
      $region10: #{tpu_custom_call.1} parent=5 // pred_check_branch
        %335 = sbr.rel (%p332) target = $region12
      $region11: #{tpu_custom_call.1} parent=5 // pred_region
        %s336 = ssub.s32 %s23, 1
        // Predicated region
        $region13: #{tpu_custom_call.1} parent=11 // pred_check
          %p337 = pneg %p84
        $region14: #{tpu_custom_call.1} parent=11 // pred_check_branch
          %339 = sbr.rel (%p337) target = $region16
        $region15: #{tpu_custom_call.1} parent=11 // pred_region
          _
        $region16: #{tpu_custom_call.1} parent=11 // pred_fallthru
          _
        // Predicated region
        $region17: #{tpu_custom_call.1} parent=11 // pred_check
          %p340 = pneg %p105
        $region18: #{tpu_custom_call.1} parent=11 // pred_check_branch
          %342 = sbr.rel (%p340) target = $region20
        $region19: #{tpu_custom_call.1} parent=11 // pred_region
          %s344 = ssub.s32 5120, 5120
          %345 = vsyncadd [#allocation9], %s344
          %s346 = sshll.u32 [#allocation8], 4
          %s347 = int_to_ptr.vmem [resolvable:$true] %s346
          %352 = dma.hbm_to_vmem [thread:$0]  %s2, 5120, %s347, [#allocation9], 320, 320, 20
        $region20: #{tpu_custom_call.1} parent=11 // pred_fallthru
          _
        // Predicated region
        $region21: #{tpu_custom_call.1} parent=11 // pred_check
          %p353 = pneg %p126
        $region22: #{tpu_custom_call.1} parent=11 // pred_check_branch
          %355 = sbr.rel (%p353) target = $region24
        $region23: #{tpu_custom_call.1} parent=11 // pred_region
          _
        $region24: #{tpu_custom_call.1} parent=11 // pred_fallthru
          _
        // Predicated region
        $region25: #{tpu_custom_call.1} parent=11 // pred_check
          %p356 = pneg %p147
        $region26: #{tpu_custom_call.1} parent=11 // pred_check_branch
          %358 = sbr.rel (%p356) target = $region28
        $region27: #{tpu_custom_call.1} parent=11 // pred_region
          _
        $region28: #{tpu_custom_call.1} parent=11 // pred_fallthru
          _
        // Predicated region
        $region29: #{tpu_custom_call.1} parent=11 // pred_check
          %p359 = pneg %p168
        $region30: #{tpu_custom_call.1} parent=11 // pred_check_branch
          %361 = sbr.rel (%p359) target = $region32
        $region31: #{tpu_custom_call.1} parent=11 // pred_region
          _
        $region32: #{tpu_custom_call.1} parent=11 // pred_fallthru
          _
        // Predicated region
        $region33: #{tpu_custom_call.1} parent=11 // pred_check
          %p362 = pneg %p189
        $region34: #{tpu_custom_call.1} parent=11 // pred_check_branch
          %364 = sbr.rel (%p362) target = $region36
        $region35: #{tpu_custom_call.1} parent=11 // pred_region
          %s366 = ssub.s32 8192, 8192
          %367 = vsyncadd [#allocation12], %s366
          %s368 = sshll.u32 [#allocation11], 4
          %s369 = int_to_ptr.vmem [resolvable:$true] %s368
          %374 = dma.hbm_to_vmem [thread:$0]  %s6, 8192, %s369, [#allocation12], 128, 128, 8
        $region36: #{tpu_custom_call.1} parent=11 // pred_fallthru
          _
        // Predicated region
        $region37: #{tpu_custom_call.1} parent=11 // pred_check
          %p375 = pneg %p210
        $region38: #{tpu_custom_call.1} parent=11 // pred_check_branch
          %377 = sbr.rel (%p375) target = $region40
        $region39: #{tpu_custom_call.1} parent=11 // pred_region
          _
        $region40: #{tpu_custom_call.1} parent=11 // pred_fallthru
          _
        // Predicated region
        $region41: #{tpu_custom_call.1} parent=11 // pred_check
          %p378 = pneg %p231
        $region42: #{tpu_custom_call.1} parent=11 // pred_check_branch
          %380 = sbr.rel (%p378) target = $region44
        $region43: #{tpu_custom_call.1} parent=11 // pred_region
          _
        $region44: #{tpu_custom_call.1} parent=11 // pred_fallthru
          _
        // Predicated region
        $region45: #{tpu_custom_call.1} parent=11 // pred_check
          %p381 = pneg %p252
        $region46: #{tpu_custom_call.1} parent=11 // pred_check_branch
          %383 = sbr.rel (%p381) target = $region48
        $region47: #{tpu_custom_call.1} parent=11 // pred_region
          _
        $region48: #{tpu_custom_call.1} parent=11 // pred_fallthru
          _
        // Predicated region
        $region49: #{tpu_custom_call.1} parent=11 // pred_check
          %p384 = pneg %p273
        $region50: #{tpu_custom_call.1} parent=11 // pred_check_branch
          %386 = sbr.rel (%p384) target = $region52
        $region51: #{tpu_custom_call.1} parent=11 // pred_region
          _
        $region52: #{tpu_custom_call.1} parent=11 // pred_fallthru
          _
        // Predicated region
        $region53: #{tpu_custom_call.1} parent=11 // pred_check
          %p387 = pneg %p294
        $region54: #{tpu_custom_call.1} parent=11 // pred_check_branch
          %389 = sbr.rel (%p387) target = $region56
        $region55: #{tpu_custom_call.1} parent=11 // pred_region
          _
        $region56: #{tpu_custom_call.1} parent=11 // pred_fallthru
          _
      $region12: #{tpu_custom_call.1} parent=5 // pred_fallthru
        _
      %p390 = scmp.lt.s32.totalorder %s23, 4
      // Predicated region
      $region57: #{tpu_custom_call.1} parent=5 // pred_check
        %p391 = pneg %p390
      $region58: #{tpu_custom_call.1} parent=5 // pred_check_branch
        %393 = sbr.rel (%p391) target = $region60
      $region59: #{tpu_custom_call.1} parent=5 // pred_region
        // Predicated region
        $region61: #{tpu_custom_call.1} parent=59 // pred_check
          %p394 = pneg %p57
        $region62: #{tpu_custom_call.1} parent=59 // pred_check_branch
          %396 = sbr.rel (%p394) target = $region64
        $region63: #{tpu_custom_call.1} parent=59 // pred_region
          %p397 = scmp.lt.s32.totalorder %s31, 1
          %s398 = scalar_select %p397, %s31, 1
          %p399 = scmp.lt.s32.totalorder %s30, 1
          %s400 = scalar_select %p399, %s30, 1
          %s401 = smul.addr %s400, 8
          %s402 = smul.addr %s398, 16
          %s403 = sadd.s32 %s401, %s402
          %s404 = smul.addr %s403, 4
          %s405 = scalar_lea.vmem %s0, %s404
        $region64: #{tpu_custom_call.1} parent=59 // pred_fallthru
          _
      $region60: #{tpu_custom_call.1} parent=5 // pred_fallthru
        _
      %p406 = scmp.le.s32.totalorder 1, %s23
      %p407 = scmp.lt.s32.totalorder %s23, 5
      %p408 = pnand %p406, %p407
      %p409 = pneg %p408
      // Predicated region
      $region65: #{tpu_custom_call.1} parent=5 // pred_check
        _
      $region66: #{tpu_custom_call.1} parent=5 // pred_check_branch
        %411 = sbr.rel (%p408) target = $region68
      $region67: #{tpu_custom_call.1} parent=5 // pred_region
        %s412 = ssub.s32 %s23, 1
        // Predicated region
        $region69: #{tpu_custom_call.1} parent=67 // pred_check
          %p413 = pneg %p105
        $region70: #{tpu_custom_call.1} parent=67 // pred_check_branch
          %415 = sbr.rel (%p413) target = $region72
        $region71: #{tpu_custom_call.1} parent=67 // pred_region
          %416 = dma.done [#allocation9], 5120
        $region72: #{tpu_custom_call.1} parent=67 // pred_fallthru
          _
        // Predicated region
        $region73: #{tpu_custom_call.1} parent=67 // pred_check
          %p417 = pneg %p189
        $region74: #{tpu_custom_call.1} parent=67 // pred_check_branch
          %419 = sbr.rel (%p417) target = $region76
        $region75: #{tpu_custom_call.1} parent=67 // pred_region
          %420 = dma.done [#allocation12], 8192
        $region76: #{tpu_custom_call.1} parent=67 // pred_fallthru
          _
        %p421 = scmp.lt.s32.totalorder %s33, 1
        %s422 = scalar_select %p421, %s33, 1
        %p423 = scmp.lt.s32.totalorder %s32, 1
        %s424 = scalar_select %p423, %s32, 1
        %s425 = smul.addr %s424, 8
        %s426 = smul.addr %s422, 16
        %s427 = sadd.s32 %s425, %s426
        %s428 = smul.addr %s427, 4
        %s429 = scalar_lea.vmem %s0, %s428
        %p430 = pneg %p63
        %p431 = pneg %p60
        %p432 = pneg %p84
        %p433 = pneg %p81
        %p434 = pneg %p105
        %p435 = pneg %p102
        %p436 = pneg %p126
        %p437 = pneg %p123
        %p438 = pneg %p147
        %p439 = pneg %p144
        %p440 = pneg %p168
        %p441 = pneg %p165
        %p442 = pneg %p189
        %p443 = pneg %p186
        %p444 = pneg %p210
        %p445 = pneg %p207
        %p446 = pneg %p231
        %p447 = pneg %p228
        %p448 = pneg %p252
        %p449 = pneg %p249
        %p450 = pneg %p273
        %p451 = pneg %p270
        %p452 = pneg %p294
        %p453 = pneg %p291
        %p454 = pneg %p322
        %p455 = pneg %p319
        %s456 = sand.u32 %s309, 1
        %s457 = scalar_lea.sflag [#allocation10], %s456
        %s458 = sand.u32 %s309, 1
        %s459 = smul.addr %s458, 64
        %s460 = scalar_lea.vmem [#allocation13], %s459
        %p461 = scmp.lt.s32.totalorder %s33, 1
        %s462 = scalar_select %p461, %s33, 1
        %p463 = scmp.lt.s32.totalorder %s32, 1
        %s464 = scalar_select %p463, %s32, 1
        %s465 = smul.addr %s464, 8
        %s466 = smul.addr %s462, 16
        %s467 = sadd.s32 %s465, %s466
        %s468 = smul.addr %s467, 4
        %s469 = scalar_lea.vmem %s0, %s468
        %s470 = smul.u32 8, %s33
        %p472 = scmp.eq.s32.totalorder %s33, 0
        // Predicated region
        $region77: #{tpu_custom_call.1} parent=67 // pred_check
          %p473 = pneg %p472
        $region78: #{tpu_custom_call.1} parent=67 // pred_check_branch
          %475 = sbr.rel (%p473) target = $region80
        $region79: #{tpu_custom_call.1} parent=67 // pred_region
          %476 = vst [vmem:[#allocation2] sm:$0xff] 0.0
          %477 = vst [vmem:[#allocation3] sm:$0xf] 0
          %478 = vst [vmem:[#allocation4] sm:$0xff] 0.0
          %479 = vst [vmem:[#allocation4 + $0x8] sm:$0xff] 0.0
          %480 = vst [vmem:[#allocation4 + $0x10] sm:$0xff] 0.0
          %481 = vst [vmem:[#allocation4 + $0x18] sm:$0xff] 0.0
          %vm482 = vcmask 31744
          %483 = vst.msk [vmem:[#allocation5] sm:$0xff] %vm482, 0.0
        $region80: #{tpu_custom_call.1} parent=67 // pred_fallthru
          _
        %v484 = vld [vmem:[%s469] sm:$0xf]
        %v485 = vld [vmem:[%s469 + $0x4] sm:$0xf]
        %v486 = vld [vmem:[%s469 + $0x8] sm:$0xf]
        %v487 = vld [vmem:[%s469 + $0xc] sm:$0xf]
        %v488 = vld [vmem:[%s469 + $0x10] sm:$0xf]
        %v489 = vld [vmem:[%s469 + $0x14] sm:$0xf]
        %v490 = vld [vmem:[%s469 + $0x18] sm:$0xf]
        %v491 = vld [vmem:[%s469 + $0x1c] sm:$0xf]
        %v492 = vld [vmem:[%s1] sm:$0xff]
        %v493 = vld [vmem:[%s1 + $0x8] sm:$0xff]
        %v494 = vld [vmem:[%s1 + $0x10] sm:$0xf]
        %v495 = vld [vmem:[%s1 + $0x14] sm:$0xff]
        %v496 = vld [vmem:[%s1 + $0x1c] sm:$0xff]
        %v497 = vld [vmem:[%s1 + $0x24] sm:$0xf]
        %v498 = vld [vmem:[%s1 + $0x28] sm:$0x11]
        %v499 = vld [vmem:[%s1 + $0x30] sm:$0x11]
        %v500 = vld [vmem:[%s1 + $0x38] sm:$0x1]
        %v501 = vld [vmem:[%s3] sm:$0x1f]
        %v503 = vlaneseq
        %v504 = vshrl.u32 %v503, 7
        %v505 = vsub.s32 0, %v504
        %v506 = vrot.slane %v501, %v505
        %v507 = vlaneseq
        %v508 = vshrl.u32 %v507, 7
        %v509 = vsub.s32 1, %v508
        %v510 = vrot.slane %v501, %v509
        %v511 = vlaneseq
        %v512 = vshrl.u32 %v511, 7
        %v513 = vsub.s32 2, %v512
        %v514 = vrot.slane %v501, %v513
        %v515 = vlaneseq
        %v516 = vshrl.u32 %v515, 7
        %v517 = vsub.s32 3, %v516
        %v518 = vrot.slane %v501, %v517
        %v519 = vlaneseq
        %v520 = vshrl.u32 %v519, 7
        %v521 = vsub.s32 4, %v520
        %v522 = vrot.slane %v501, %v521
        %v536 = vunpack.c.l.b16 %v484
        %v537 = vunpack.c.l.b16 %v485
        %v538 = vunpack.c.l.b16 %v486
        %v539 = vunpack.c.l.b16 %v487
        %v540 = vunpack.c.l.b16 %v488
        %v541 = vunpack.c.l.b16 %v489
        %v542 = vunpack.c.l.b16 %v490
        %v543 = vunpack.c.l.b16 %v491
        %v544 = vpack.c.b16 %v537, %v536
        %v545 = vpack.c.b16 %v539, %v538
        %v546 = vpack.c.b16 %v541, %v540
        %v547 = vpack.c.b16 %v543, %v542
        %v557 = vunpack.c.l.b16 %v492
        %v558 = vunpack.c.h.b16 %v492
        %v559 = vunpack.c.l.b16 %v493
        %v560 = vunpack.c.h.b16 %v493
        %v561 = vunpack.c.l.b16 %v494
        %v562 = vunpack.c.l.b16 %v495
        %v563 = vunpack.c.h.b16 %v495
        %v564 = vunpack.c.l.b16 %v496
        %v565 = vunpack.c.h.b16 %v496
        %v566 = vunpack.c.l.b16 %v497
        %v567 = vunpack.c.l.b16 %v498
        %v568 = vunpack.c.h.b16 %v498
        %v569 = vunpack.c.l.b16 %v499
        %v570 = vunpack.c.h.b16 %v499
        %v571 = vunpack.c.l.b16 %v500
        %v572 = vpack.c.b16 %v562, %v557
        %v573 = vpack.c.b16 %v563, %v558
        %v574 = vpack.c.b16 %v564, %v559
        %v575 = vpack.c.b16 %v565, %v560
        %v576 = vpack.c.b16 %v566, %v561
        %v577 = vpack.c.b16 %v567, %v567
        %v578 = vpack.c.b16 %v568, %v568
        %v579 = vpack.c.b16 %v569, %v569
        %v580 = vpack.c.b16 %v570, %v570
        %v581 = vpack.c.b16 %v571, %v571
        %vm587 = vcmask 138240
        %v589 = vsel %vm587, %v544, 0
        %v592 = vsel %vm587, %v545, 0
        %v595 = vsel %vm587, %v546, 0
        %v598 = vsel %vm587, %v547, 0
        %vm600 = vcmask 1040384
        %v601 = vsel 0, 4294967295, 65535
        %v602 = vsel %vm600, %v601, 0
        %v604 = vand.u32 %v577, %v602
        %v607 = vand.u32 %v578, %v602
        %v610 = vand.u32 %v579, %v602
        %v613 = vand.u32 %v580, %v602
        %v616 = vand.u32 %v581, %v602
        %618 = vmatprep.subr.bf16.mxu0 %v573
        %619 = vmatpush1.bf16.msra.mxu0 %v572
        %620 = vmatprep.subr.bf16.mxu0 %v607
        %621 = vmatpush1.bf16.msra.mxu0 %v604
        %622 = vmatprep.subr.bf16.mxu0 0
        %623 = vmatpush1.bf16.msra.mxu0 0
        %624 = vmatprep.subr.bf16.mxu0 0
        %625 = vmatpush1.bf16.msra.mxu0 0
        %626 = vmatprep.subr.bf16.mxu0 0
        %627 = vmatpush1.bf16.msra.mxu0 0
        %628 = vmatprep.subr.bf16.mxu0 0
        %629 = vmatpush1.bf16.msra.mxu0 0
        %630 = vmatprep.subr.bf16.mxu0 0
        %631 = vmatpush1.bf16.msra.mxu0 0
        %632 = vmatprep.subr.bf16.mxu0 0
        %633 = vmatpush1.bf16.msra.mxu0 0
        %634 = vmatprep.subr.bf16.mxu0 0
        %635 = vmatpush1.bf16.msra.mxu0 0
        %636 = vmatprep.subr.bf16.mxu0 0
        %637 = vmatpush1.bf16.msra.mxu0 0
        %638 = vmatprep.subr.bf16.mxu0 0
        %639 = vmatpush1.bf16.msra.mxu0 0
        %640 = vmatprep.subr.bf16.mxu0 0
        %641 = vmatpush1.bf16.msra.mxu0 0
        %642 = vmatprep.subr.bf16.mxu0 0
        %643 = vmatpush1.bf16.msra.mxu0 0
        %644 = vmatprep.subr.bf16.mxu0 0
        %645 = vmatpush1.bf16.msra.mxu0 0
        %646 = vmatprep.subr.bf16.mxu0 0
        %647 = vmatpush1.bf16.msra.mxu0 0
        %648 = vmatprep.subr.bf16.mxu0 0
        %649 = vmatpush1.bf16.msra.mxu0 0
        %650 = vmatprep.mubr.bf16.mxu0 0
        %651 = vmatmul.mubr.bf16.gmra.mrb[0].mxu0 %v589
        %v652 = vpop.f32.mrb[0].mxu0
        %v653 = vadd.f32 %v506, %v652
        %v654 = vpop.f32.mrb[0].mxu0
        %v655 = vadd.f32 %v510, %v654
        %v656 = vpop.f32.mrb[0].mxu0
        %v657 = vadd.f32 %v506, %v656
        %v658 = vpop.f32.mrb[0].mxu0
        %v659 = vadd.f32 %v510, %v658
        %660 = vmatprep.mubr.bf16.mxu0 0
        %661 = vmatmul.mubr.bf16.gmra.mrb[0].mxu0 %v592
        %v662 = vpop.f32.mrb[0].mxu0
        %v663 = vadd.f32 %v506, %v662
        %v664 = vpop.f32.mrb[0].mxu0
        %v665 = vadd.f32 %v510, %v664
        %v666 = vpop.f32.mrb[0].mxu0
        %v667 = vadd.f32 %v506, %v666
        %v668 = vpop.f32.mrb[0].mxu0
        %v669 = vadd.f32 %v510, %v668
        %670 = vmatprep.mubr.bf16.mxu0 0
        %671 = vmatmul.mubr.bf16.gmra.mrb[0].mxu0 %v595
        %v672 = vpop.f32.mrb[0].mxu0
        %v673 = vadd.f32 %v506, %v672
        %v674 = vpop.f32.mrb[0].mxu0
        %v675 = vadd.f32 %v510, %v674
        %v676 = vpop.f32.mrb[0].mxu0
        %v677 = vadd.f32 %v506, %v676
        %v678 = vpop.f32.mrb[0].mxu0
        %v679 = vadd.f32 %v510, %v678
        %680 = vmatprep.mubr.bf16.mxu0 0
        %681 = vmatmul.mubr.bf16.gmra.mrb[0].mxu0 %v598
        %v682 = vpop.f32.mrb[0].mxu0
        %v683 = vadd.f32 %v506, %v682
        %v684 = vpop.f32.mrb[0].mxu0
        %v685 = vadd.f32 %v510, %v684
        %v686 = vpop.f32.mrb[0].mxu0
        %v687 = vadd.f32 %v506, %v686
        %v688 = vpop.f32.mrb[0].mxu0
        %v689 = vadd.f32 %v510, %v688
        %690 = vdwg.mxu0
        %691 = vmatprep.subr.bf16.mxu0 %v575
        %692 = vmatpush1.bf16.msra.mxu0 %v574
        %693 = vmatprep.subr.bf16.mxu0 %v613
        %694 = vmatpush1.bf16.msra.mxu0 %v610
        %695 = vmatprep.subr.bf16.mxu0 0
        %696 = vmatpush1.bf16.msra.mxu0 0
        %697 = vmatprep.subr.bf16.mxu0 0
        %698 = vmatpush1.bf16.msra.mxu0 0
        %699 = vmatprep.subr.bf16.mxu0 0
        %700 = vmatpush1.bf16.msra.mxu0 0
        %701 = vmatprep.subr.bf16.mxu0 0
        %702 = vmatpush1.bf16.msra.mxu0 0
        %703 = vmatprep.subr.bf16.mxu0 0
        %704 = vmatpush1.bf16.msra.mxu0 0
        %705 = vmatprep.subr.bf16.mxu0 0
        %706 = vmatpush1.bf16.msra.mxu0 0
        %707 = vmatprep.subr.bf16.mxu0 0
        %708 = vmatpush1.bf16.msra.mxu0 0
        %709 = vmatprep.subr.bf16.mxu0 0
        %710 = vmatpush1.bf16.msra.mxu0 0
        %711 = vmatprep.subr.bf16.mxu0 0
        %712 = vmatpush1.bf16.msra.mxu0 0
        %713 = vmatprep.subr.bf16.mxu0 0
        %714 = vmatpush1.bf16.msra.mxu0 0
        %715 = vmatprep.subr.bf16.mxu0 0
        %716 = vmatpush1.bf16.msra.mxu0 0
        %717 = vmatprep.subr.bf16.mxu0 0
        %718 = vmatpush1.bf16.msra.mxu0 0
        %719 = vmatprep.subr.bf16.mxu0 0
        %720 = vmatpush1.bf16.msra.mxu0 0
        %721 = vmatprep.subr.bf16.mxu0 0
        %722 = vmatpush1.bf16.msra.mxu0 0
        %723 = vmatprep.mubr.bf16.mxu0 0
        %724 = vmatmul.mubr.bf16.gmra.mrb[0].mxu0 %v589
        %v725 = vpop.f32.mrb[0].mxu0
        %v726 = vadd.f32 %v514, %v725
        %v727 = vpop.f32.mrb[0].mxu0
        %v728 = vadd.f32 %v518, %v727
        %v729 = vpop.f32.mrb[0].mxu0
        %v730 = vadd.f32 %v514, %v729
        %v731 = vpop.f32.mrb[0].mxu0
        %v732 = vadd.f32 %v518, %v731
        %733 = vmatprep.mubr.bf16.mxu0 0
        %734 = vmatmul.mubr.bf16.gmra.mrb[0].mxu0 %v592
        %v735 = vpop.f32.mrb[0].mxu0
        %v736 = vadd.f32 %v514, %v735
        %v737 = vpop.f32.mrb[0].mxu0
        %v738 = vadd.f32 %v518, %v737
        %v739 = vpop.f32.mrb[0].mxu0
        %v740 = vadd.f32 %v514, %v739
        %v741 = vpop.f32.mrb[0].mxu0
        %v742 = vadd.f32 %v518, %v741
        %743 = vmatprep.mubr.bf16.mxu0 0
        %744 = vmatmul.mubr.bf16.gmra.mrb[0].mxu0 %v595
        %v745 = vpop.f32.mrb[0].mxu0
        %v746 = vadd.f32 %v514, %v745
        %v747 = vpop.f32.mrb[0].mxu0
        %v748 = vadd.f32 %v518, %v747
        %v749 = vpop.f32.mrb[0].mxu0
        %v750 = vadd.f32 %v514, %v749
        %v751 = vpop.f32.mrb[0].mxu0
        %v752 = vadd.f32 %v518, %v751
        %753 = vmatprep.mubr.bf16.mxu0 0
        %754 = vmatmul.mubr.bf16.gmra.mrb[0].mxu0 %v598
        %v755 = vpop.f32.mrb[0].mxu0
        %v756 = vadd.f32 %v514, %v755
        %v757 = vpop.f32.mrb[0].mxu0
        %v758 = vadd.f32 %v518, %v757
        %v759 = vpop.f32.mrb[0].mxu0
        %v760 = vadd.f32 %v514, %v759
        %v761 = vpop.f32.mrb[0].mxu0
        %v762 = vadd.f32 %v518, %v761
        %763 = vdwg.mxu0
        %764 = vmatprep.subr.bf16.mxu0 0
        %765 = vmatpush1.bf16.msra.mxu0 %v576
        %766 = vmatprep.subr.bf16.mxu0 0
        %767 = vmatpush1.bf16.msra.mxu0 %v616
        %768 = vmatprep.subr.bf16.mxu0 0
        %769 = vmatpush1.bf16.msra.mxu0 0
        %770 = vmatprep.subr.bf16.mxu0 0
        %771 = vmatpush1.bf16.msra.mxu0 0
        %772 = vmatprep.subr.bf16.mxu0 0
        %773 = vmatpush1.bf16.msra.mxu0 0
        %774 = vmatprep.subr.bf16.mxu0 0
        %775 = vmatpush1.bf16.msra.mxu0 0
        %776 = vmatprep.subr.bf16.mxu0 0
        %777 = vmatpush1.bf16.msra.mxu0 0
        %778 = vmatprep.subr.bf16.mxu0 0
        %779 = vmatpush1.bf16.msra.mxu0 0
        %780 = vmatprep.subr.bf16.mxu0 0
        %781 = vmatpush1.bf16.msra.mxu0 0
        %782 = vmatprep.subr.bf16.mxu0 0
        %783 = vmatpush1.bf16.msra.mxu0 0
        %784 = vmatprep.subr.bf16.mxu0 0
        %785 = vmatpush1.bf16.msra.mxu0 0
        %786 = vmatprep.subr.bf16.mxu0 0
        %787 = vmatpush1.bf16.msra.mxu0 0
        %788 = vmatprep.subr.bf16.mxu0 0
        %789 = vmatpush1.bf16.msra.mxu0 0
        %790 = vmatprep.subr.bf16.mxu0 0
        %791 = vmatpush1.bf16.msra.mxu0 0
        %792 = vmatprep.subr.bf16.mxu0 0
        %793 = vmatpush1.bf16.msra.mxu0 0
        %794 = vmatprep.subr.bf16.mxu0 0
        %795 = vmatpush1.bf16.msra.mxu0 0
        %796 = vmatprep.mubr.bf16.mxu0 0
        %797 = vmatmul.mubr.bf16.gmra.mrb[0].mxu0 %v589
        %v798 = vpop.f32.mrb[0].mxu0
        %v799 = vadd.f32 %v522, %v798
        %v800 = vpop.f32.mrb[0].mxu0
        %v801 = vpop.f32.mrb[0].mxu0
        %v802 = vadd.f32 %v522, %v801
        %v803 = vpop.f32.mrb[0].mxu0
        %804 = vmatprep.mubr.bf16.mxu0 0
        %805 = vmatmul.mubr.bf16.gmra.mrb[0].mxu0 %v592
        %v806 = vpop.f32.mrb[0].mxu0
        %v807 = vadd.f32 %v522, %v806
        %v808 = vpop.f32.mrb[0].mxu0
        %v809 = vpop.f32.mrb[0].mxu0
        %v810 = vadd.f32 %v522, %v809
        %v811 = vpop.f32.mrb[0].mxu0
        %812 = vmatprep.mubr.bf16.mxu0 0
        %813 = vmatmul.mubr.bf16.gmra.mrb[0].mxu0 %v595
        %v814 = vpop.f32.mrb[0].mxu0
        %v815 = vadd.f32 %v522, %v814
        %v816 = vpop.f32.mrb[0].mxu0
        %v817 = vpop.f32.mrb[0].mxu0
        %v818 = vadd.f32 %v522, %v817
        %v819 = vpop.f32.mrb[0].mxu0
        %820 = vmatprep.mubr.bf16.mxu0 0
        %821 = vmatmul.mubr.bf16.gmra.mrb[0].mxu0 %v598
        %v822 = vpop.f32.mrb[0].mxu0
        %v823 = vadd.f32 %v522, %v822
        %v824 = vpop.f32.mrb[0].mxu0
        %v825 = vpop.f32.mrb[0].mxu0
        %v826 = vadd.f32 %v522, %v825
        %v827 = vpop.f32.mrb[0].mxu0
        %828 = vdwg.mxu0
        %829 = vst [vmem:[#allocation6] sm:$0xff] %v653
        %830 = vst [vmem:[#allocation6 + $0x8] sm:$0xff] %v655
        %831 = vst [vmem:[#allocation6 + $0x10] sm:$0xff] %v726
        %832 = vst [vmem:[#allocation6 + $0x18] sm:$0xff] %v728
        %833 = vst [vmem:[#allocation6 + $0x20] sm:$0xff] %v799
        %834 = vst [vmem:[#allocation6 + $0x28] sm:$0xff] %v657
        %835 = vst [vmem:[#allocation6 + $0x30] sm:$0xff] %v659
        %836 = vst [vmem:[#allocation6 + $0x38] sm:$0xff] %v730
        %837 = vst [vmem:[#allocation6 + $0x40] sm:$0xff] %v732
        %838 = vst [vmem:[#allocation6 + $0x48] sm:$0xff] %v802
        %839 = vst [vmem:[#allocation6 + $0x50] sm:$0xff] %v663
        %840 = vst [vmem:[#allocation6 + $0x58] sm:$0xff] %v665
        %841 = vst [vmem:[#allocation6 + $0x60] sm:$0xff] %v736
        %842 = vst [vmem:[#allocation6 + $0x68] sm:$0xff] %v738
        %843 = vst [vmem:[#allocation6 + $0x70] sm:$0xff] %v807
        %844 = vst [vmem:[#allocation6 + $0x78] sm:$0xff] %v667
        %845 = vst [vmem:[#allocation6 + $0x80] sm:$0xff] %v669
        %846 = vst [vmem:[#allocation6 + $0x88] sm:$0xff] %v740
        %847 = vst [vmem:[#allocation6 + $0x90] sm:$0xff] %v742
        %848 = vst [vmem:[#allocation6 + $0x98] sm:$0xff] %v810
        %849 = vst [vmem:[#allocation6 + $0xa0] sm:$0xff] %v673
        %850 = vst [vmem:[#allocation6 + $0xa8] sm:$0xff] %v675
        %851 = vst [vmem:[#allocation6 + $0xb0] sm:$0xff] %v746
        %852 = vst [vmem:[#allocation6 + $0xb8] sm:$0xff] %v748
        %853 = vst [vmem:[#allocation6 + $0xc0] sm:$0xff] %v815
        %854 = vst [vmem:[#allocation6 + $0xc8] sm:$0xff] %v677
        %855 = vst [vmem:[#allocation6 + $0xd0] sm:$0xff] %v679
        %856 = vst [vmem:[#allocation6 + $0xd8] sm:$0xff] %v750
        %857 = vst [vmem:[#allocation6 + $0xe0] sm:$0xff] %v752
        %858 = vst [vmem:[#allocation6 + $0xe8] sm:$0xff] %v818
        %859 = vst [vmem:[#allocation6 + $0xf0] sm:$0xff] %v683
        %860 = vst [vmem:[#allocation6 + $0xf8] sm:$0xff] %v685
        %861 = vst [vmem:[#allocation6 + $0x100] sm:$0xff] %v756
        %862 = vst [vmem:[#allocation6 + $0x108] sm:$0xff] %v758
        %863 = vst [vmem:[#allocation6 + $0x110] sm:$0xff] %v823
        %864 = vst [vmem:[#allocation6 + $0x118] sm:$0xff] %v687
        %865 = vst [vmem:[#allocation6 + $0x120] sm:$0xff] %v689
        %866 = vst [vmem:[#allocation6 + $0x128] sm:$0xff] %v760
        %867 = vst [vmem:[#allocation6 + $0x130] sm:$0xff] %v762
        %868 = vst [vmem:[#allocation6 + $0x138] sm:$0xff] %v826
        %v869 = vld [vmem:[#allocation2] sm:$0xff]
        %v870 = vld [vmem:[#allocation3] sm:$0xf]
        %v871 = vld [vmem:[#allocation5] sm:$0xff]
        loop: start=0, step=1, limit=8
        $region81: #{tpu_custom_call.1} parent=67 // loop_pre_header
          _
        $region82: #{tpu_custom_call.1} parent=67 // loop_header
          %s873 = sphi 0, %s877
          %p874 = scmp.ge.s32.totalorder %s873, 8
          %v878 = vphi %v869, %v1394
          %v879 = vphi %v870, %v1397
          %v880 = vphi %v871, %v1415
        $region83: #{tpu_custom_call.1} parent=67 // loop_header_branch
          %876 = sbr.rel (%p874) target = $region87
        $region84: #{tpu_custom_call.1} parent=67 // loop_body
          %s881 = smul.u32 %s33, 8
          %s882 = sadd.s32 %s881, %s873
          %s883 = smul.u32 %s873, 8
          %s884 = sshra.s32 %s883, 3
          %s885 = sand.u32 %s883, 7
          %s886 = smul.u32 %s884, 5
          %s887 = smul.addr %s886, 8
          %s888 = scalar_lea.vmem [#allocation6], %s887
          %v889 = vld [vmem:[%s888] sm:$0xff]
          %v890 = vld [vmem:[%s888 + $0x8] sm:$0xff]
          %v891 = vld [vmem:[%s888 + $0x10] sm:$0xff]
          %v892 = vld [vmem:[%s888 + $0x18] sm:$0xff]
          %v893 = vld [vmem:[%s888 + $0x20] sm:$0xff]
          %v894 = vld [vmem:[#allocation8] sm:$0xff]
          %v895 = vld [vmem:[#allocation8 + $0x8] sm:$0xff]
          %v896 = vld [vmem:[#allocation8 + $0x10] sm:$0xf]
          %v897 = vld [vmem:[#allocation8 + $0x14] sm:$0xff]
          %v898 = vld [vmem:[#allocation8 + $0x1c] sm:$0xff]
          %v899 = vld [vmem:[#allocation8 + $0x24] sm:$0xf]
          %v900 = vld [vmem:[#allocation8 + $0x28] sm:$0xff]
          %v901 = vld [vmem:[#allocation8 + $0x30] sm:$0xff]
          %v902 = vld [vmem:[#allocation8 + $0x38] sm:$0xf]
          %v903 = vld [vmem:[#allocation8 + $0x3c] sm:$0xff]
          %v904 = vld [vmem:[#allocation8 + $0x44] sm:$0xff]
          %v905 = vld [vmem:[#allocation8 + $0x4c] sm:$0xf]
          %v906 = vld [vmem:[#allocation8 + $0x50] sm:$0xff]
          %v907 = vld [vmem:[#allocation8 + $0x58] sm:$0xff]
          %v908 = vld [vmem:[#allocation8 + $0x60] sm:$0xf]
          %v909 = vld [vmem:[#allocation8 + $0x64] sm:$0xff]
          %v910 = vld [vmem:[#allocation8 + $0x6c] sm:$0xff]
          %v911 = vld [vmem:[#allocation8 + $0x74] sm:$0xf]
          %v912 = vld [vmem:[#allocation8 + $0x78] sm:$0xff]
          %v913 = vld [vmem:[#allocation8 + $0x80] sm:$0xff]
          %v914 = vld [vmem:[#allocation8 + $0x88] sm:$0xf]
          %v915 = vld [vmem:[#allocation8 + $0x8c] sm:$0xff]
          %v916 = vld [vmem:[#allocation8 + $0x94] sm:$0xff]
          %v917 = vld [vmem:[#allocation8 + $0x9c] sm:$0xf]
          %v918 = vld [vmem:[#allocation8 + $0xa0] sm:$0xff]
          %v919 = vld [vmem:[#allocation8 + $0xa8] sm:$0xff]
          %v920 = vld [vmem:[#allocation8 + $0xb0] sm:$0xf]
          %v921 = vld [vmem:[#allocation8 + $0xb4] sm:$0xff]
          %v922 = vld [vmem:[#allocation8 + $0xbc] sm:$0xff]
          %v923 = vld [vmem:[#allocation8 + $0xc4] sm:$0xf]
          %v924 = vld [vmem:[#allocation8 + $0xc8] sm:$0xff]
          %v925 = vld [vmem:[#allocation8 + $0xd0] sm:$0xff]
          %v926 = vld [vmem:[#allocation8 + $0xd8] sm:$0xf]
          %v927 = vld [vmem:[#allocation8 + $0xdc] sm:$0xff]
          %v928 = vld [vmem:[#allocation8 + $0xe4] sm:$0xff]
          %v929 = vld [vmem:[#allocation8 + $0xec] sm:$0xf]
          %v930 = vld [vmem:[#allocation8 + $0xf0] sm:$0xff]
          %v931 = vld [vmem:[#allocation8 + $0xf8] sm:$0xff]
          %v932 = vld [vmem:[#allocation8 + $0x100] sm:$0xf]
          %v933 = vld [vmem:[#allocation8 + $0x104] sm:$0xff]
          %v934 = vld [vmem:[#allocation8 + $0x10c] sm:$0xff]
          %v935 = vld [vmem:[#allocation8 + $0x114] sm:$0xf]
          %v936 = vld [vmem:[#allocation8 + $0x118] sm:$0xff]
          %v937 = vld [vmem:[#allocation8 + $0x120] sm:$0xff]
          %v938 = vld [vmem:[#allocation8 + $0x128] sm:$0xf]
          %v939 = vld [vmem:[#allocation8 + $0x12c] sm:$0xff]
          %v940 = vld [vmem:[#allocation8 + $0x134] sm:$0xff]
          %v941 = vld [vmem:[#allocation8 + $0x13c] sm:$0xf]
          %v990 = vunpack.c.l.b16 %v894
          %v991 = vunpack.c.h.b16 %v894
          %v992 = vunpack.c.l.b16 %v895
          %v993 = vunpack.c.h.b16 %v895
          %v994 = vunpack.c.l.b16 %v896
          %v995 = vunpack.c.l.b16 %v897
          %v996 = vunpack.c.h.b16 %v897
          %v997 = vunpack.c.l.b16 %v898
          %v998 = vunpack.c.h.b16 %v898
          %v999 = vunpack.c.l.b16 %v899
          %v1000 = vunpack.c.l.b16 %v900
          %v1001 = vunpack.c.h.b16 %v900
          %v1002 = vunpack.c.l.b16 %v901
          %v1003 = vunpack.c.h.b16 %v901
          %v1004 = vunpack.c.l.b16 %v902
          %v1005 = vunpack.c.l.b16 %v903
          %v1006 = vunpack.c.h.b16 %v903
          %v1007 = vunpack.c.l.b16 %v904
          %v1008 = vunpack.c.h.b16 %v904
          %v1009 = vunpack.c.l.b16 %v905
          %v1010 = vunpack.c.l.b16 %v906
          %v1011 = vunpack.c.h.b16 %v906
          %v1012 = vunpack.c.l.b16 %v907
          %v1013 = vunpack.c.h.b16 %v907
          %v1014 = vunpack.c.l.b16 %v908
          %v1015 = vunpack.c.l.b16 %v909
          %v1016 = vunpack.c.h.b16 %v909
          %v1017 = vunpack.c.l.b16 %v910
          %v1018 = vunpack.c.h.b16 %v910
          %v1019 = vunpack.c.l.b16 %v911
          %v1020 = vunpack.c.l.b16 %v912
          %v1021 = vunpack.c.h.b16 %v912
          %v1022 = vunpack.c.l.b16 %v913
          %v1023 = vunpack.c.h.b16 %v913
          %v1024 = vunpack.c.l.b16 %v914
          %v1025 = vunpack.c.l.b16 %v915
          %v1026 = vunpack.c.h.b16 %v915
          %v1027 = vunpack.c.l.b16 %v916
          %v1028 = vunpack.c.h.b16 %v916
          %v1029 = vunpack.c.l.b16 %v917
          %v1030 = vunpack.c.l.b16 %v918
          %v1031 = vunpack.c.h.b16 %v918
          %v1032 = vunpack.c.l.b16 %v919
          %v1033 = vunpack.c.h.b16 %v919
          %v1034 = vunpack.c.l.b16 %v920
          %v1035 = vunpack.c.l.b16 %v921
          %v1036 = vunpack.c.h.b16 %v921
          %v1037 = vunpack.c.l.b16 %v922
          %v1038 = vunpack.c.h.b16 %v922
          %v1039 = vunpack.c.l.b16 %v923
          %v1040 = vunpack.c.l.b16 %v924
          %v1041 = vunpack.c.h.b16 %v924
          %v1042 = vunpack.c.l.b16 %v925
          %v1043 = vunpack.c.h.b16 %v925
          %v1044 = vunpack.c.l.b16 %v926
          %v1045 = vunpack.c.l.b16 %v927
          %v1046 = vunpack.c.h.b16 %v927
          %v1047 = vunpack.c.l.b16 %v928
          %v1048 = vunpack.c.h.b16 %v928
          %v1049 = vunpack.c.l.b16 %v929
          %v1050 = vunpack.c.l.b16 %v930
          %v1051 = vunpack.c.h.b16 %v930
          %v1052 = vunpack.c.l.b16 %v931
          %v1053 = vunpack.c.h.b16 %v931
          %v1054 = vunpack.c.l.b16 %v932
          %v1055 = vunpack.c.l.b16 %v933
          %v1056 = vunpack.c.h.b16 %v933
          %v1057 = vunpack.c.l.b16 %v934
          %v1058 = vunpack.c.h.b16 %v934
          %v1059 = vunpack.c.l.b16 %v935
          %v1060 = vunpack.c.l.b16 %v936
          %v1061 = vunpack.c.h.b16 %v936
          %v1062 = vunpack.c.l.b16 %v937
          %v1063 = vunpack.c.h.b16 %v937
          %v1064 = vunpack.c.l.b16 %v938
          %v1065 = vunpack.c.l.b16 %v939
          %v1066 = vunpack.c.h.b16 %v939
          %v1067 = vunpack.c.l.b16 %v940
          %v1068 = vunpack.c.h.b16 %v940
          %v1069 = vunpack.c.l.b16 %v941
          %v1070 = vpack.c.b16 %v995, %v990
          %v1071 = vpack.c.b16 %v996, %v991
          %v1072 = vpack.c.b16 %v997, %v992
          %v1073 = vpack.c.b16 %v998, %v993
          %v1074 = vpack.c.b16 %v999, %v994
          %v1075 = vpack.c.b16 %v1005, %v1000
          %v1076 = vpack.c.b16 %v1006, %v1001
          %v1077 = vpack.c.b16 %v1007, %v1002
          %v1078 = vpack.c.b16 %v1008, %v1003
          %v1079 = vpack.c.b16 %v1009, %v1004
          %v1080 = vpack.c.b16 %v1015, %v1010
          %v1081 = vpack.c.b16 %v1016, %v1011
          %v1082 = vpack.c.b16 %v1017, %v1012
          %v1083 = vpack.c.b16 %v1018, %v1013
          %v1084 = vpack.c.b16 %v1019, %v1014
          %v1085 = vpack.c.b16 %v1025, %v1020
          %v1086 = vpack.c.b16 %v1026, %v1021
          %v1087 = vpack.c.b16 %v1027, %v1022
          %v1088 = vpack.c.b16 %v1028, %v1023
          %v1089 = vpack.c.b16 %v1029, %v1024
          %v1090 = vpack.c.b16 %v1035, %v1030
          %v1091 = vpack.c.b16 %v1036, %v1031
          %v1092 = vpack.c.b16 %v1037, %v1032
          %v1093 = vpack.c.b16 %v1038, %v1033
          %v1094 = vpack.c.b16 %v1039, %v1034
          %v1095 = vpack.c.b16 %v1045, %v1040
          %v1096 = vpack.c.b16 %v1046, %v1041
          %v1097 = vpack.c.b16 %v1047, %v1042
          %v1098 = vpack.c.b16 %v1048, %v1043
          %v1099 = vpack.c.b16 %v1049, %v1044
          %v1100 = vpack.c.b16 %v1055, %v1050
          %v1101 = vpack.c.b16 %v1056, %v1051
          %v1102 = vpack.c.b16 %v1057, %v1052
          %v1103 = vpack.c.b16 %v1058, %v1053
          %v1104 = vpack.c.b16 %v1059, %v1054
          %v1105 = vpack.c.b16 %v1065, %v1060
          %v1106 = vpack.c.b16 %v1066, %v1061
          %v1107 = vpack.c.b16 %v1067, %v1062
          %v1108 = vpack.c.b16 %v1068, %v1063
          %v1109 = vpack.c.b16 %v1069, %v1064
          %1150 = vmatprep.subr.bf16.mxu0 %v1071
          %1151 = vmatpush1.bf16.msra.mxu0 %v1070
          %1152 = vmatprep.subr.bf16.mxu0 %v1076
          %1153 = vmatpush1.bf16.msra.mxu0 %v1075
          %1154 = vmatprep.subr.bf16.mxu0 %v1081
          %1155 = vmatpush1.bf16.msra.mxu0 %v1080
          %1156 = vmatprep.subr.bf16.mxu0 %v1086
          %1157 = vmatpush1.bf16.msra.mxu0 %v1085
          %1158 = vmatprep.subr.bf16.mxu0 %v1091
          %1159 = vmatpush1.bf16.msra.mxu0 %v1090
          %1160 = vmatprep.subr.bf16.mxu0 %v1096
          %1161 = vmatpush1.bf16.msra.mxu0 %v1095
          %1162 = vmatprep.subr.bf16.mxu0 %v1101
          %1163 = vmatpush1.bf16.msra.mxu0 %v1100
          %1164 = vmatprep.subr.bf16.mxu0 %v1106
          %1165 = vmatpush1.bf16.msra.mxu0 %v1105
          %1166 = vmatprep.subr.bf16.mxu0 0
          %1167 = vmatpush1.bf16.msra.mxu0 0
          %1168 = vmatprep.subr.bf16.mxu0 0
          %1169 = vmatpush1.bf16.msra.mxu0 0
          %1170 = vmatprep.subr.bf16.mxu0 0
          %1171 = vmatpush1.bf16.msra.mxu0 0
          %1172 = vmatprep.subr.bf16.mxu0 0
          %1173 = vmatpush1.bf16.msra.mxu0 0
          %1174 = vmatprep.subr.bf16.mxu0 0
          %1175 = vmatpush1.bf16.msra.mxu0 0
          %1176 = vmatprep.subr.bf16.mxu0 0
          %1177 = vmatpush1.bf16.msra.mxu0 0
          %1178 = vmatprep.subr.bf16.mxu0 0
          %1179 = vmatpush1.bf16.msra.mxu0 0
          %1180 = vmatprep.subr.bf16.mxu0 0
          %1181 = vmatpush1.bf16.msra.mxu0 0
          %1182 = vmatprep.mubr.bf16.mxu0 0
          %1183 = vmatmul.mubr.bf16.gmra.mrb[0].mxu0 %v879
          %v1184 = vpop.f32.mrb[0].mxu0
          %v1185 = vadd.f32 0.0, %v1184
          %v1186 = vpop.f32.mrb[0].mxu0
          %v1187 = vadd.f32 0.0, %v1186
          %v1188 = vpop.f32.mrb[0].mxu0
          %v1189 = vpop.f32.mrb[0].mxu0
          %1190 = vdwg.mxu0
          %1191 = vmatprep.subr.bf16.mxu0 %v1073
          %1192 = vmatpush1.bf16.msra.mxu0 %v1072
          %1193 = vmatprep.subr.bf16.mxu0 %v1078
          %1194 = vmatpush1.bf16.msra.mxu0 %v1077
          %1195 = vmatprep.subr.bf16.mxu0 %v1083
          %1196 = vmatpush1.bf16.msra.mxu0 %v1082
          %1197 = vmatprep.subr.bf16.mxu0 %v1088
          %1198 = vmatpush1.bf16.msra.mxu0 %v1087
          %1199 = vmatprep.subr.bf16.mxu0 %v1093
          %1200 = vmatpush1.bf16.msra.mxu0 %v1092
          %1201 = vmatprep.subr.bf16.mxu0 %v1098
          %1202 = vmatpush1.bf16.msra.mxu0 %v1097
          %1203 = vmatprep.subr.bf16.mxu0 %v1103
          %1204 = vmatpush1.bf16.msra.mxu0 %v1102
          %1205 = vmatprep.subr.bf16.mxu0 %v1108
          %1206 = vmatpush1.bf16.msra.mxu0 %v1107
          %1207 = vmatprep.subr.bf16.mxu0 0
          %1208 = vmatpush1.bf16.msra.mxu0 0
          %1209 = vmatprep.subr.bf16.mxu0 0
          %1210 = vmatpush1.bf16.msra.mxu0 0
          %1211 = vmatprep.subr.bf16.mxu0 0
          %1212 = vmatpush1.bf16.msra.mxu0 0
          %1213 = vmatprep.subr.bf16.mxu0 0
          %1214 = vmatpush1.bf16.msra.mxu0 0
          %1215 = vmatprep.subr.bf16.mxu0 0
          %1216 = vmatpush1.bf16.msra.mxu0 0
          %1217 = vmatprep.subr.bf16.mxu0 0
          %1218 = vmatpush1.bf16.msra.mxu0 0
          %1219 = vmatprep.subr.bf16.mxu0 0
          %1220 = vmatpush1.bf16.msra.mxu0 0
          %1221 = vmatprep.subr.bf16.mxu0 0
          %1222 = vmatpush1.bf16.msra.mxu0 0
          %1223 = vmatprep.mubr.bf16.mxu0 0
          %1224 = vmatmul.mubr.bf16.gmra.mrb[0].mxu0 %v879
          %v1225 = vpop.f32.mrb[0].mxu0
          %v1226 = vadd.f32 0.0, %v1225
          %v1227 = vpop.f32.mrb[0].mxu0
          %v1228 = vadd.f32 0.0, %v1227
          %v1229 = vpop.f32.mrb[0].mxu0
          %v1230 = vpop.f32.mrb[0].mxu0
          %1231 = vdwg.mxu0
          %1232 = vmatprep.subr.bf16.mxu0 0
          %1233 = vmatpush1.bf16.msra.mxu0 %v1074
          %1234 = vmatprep.subr.bf16.mxu0 0
          %1235 = vmatpush1.bf16.msra.mxu0 %v1079
          %1236 = vmatprep.subr.bf16.mxu0 0
          %1237 = vmatpush1.bf16.msra.mxu0 %v1084
          %1238 = vmatprep.subr.bf16.mxu0 0
          %1239 = vmatpush1.bf16.msra.mxu0 %v1089
          %1240 = vmatprep.subr.bf16.mxu0 0
          %1241 = vmatpush1.bf16.msra.mxu0 %v1094
          %1242 = vmatprep.subr.bf16.mxu0 0
          %1243 = vmatpush1.bf16.msra.mxu0 %v1099
          %1244 = vmatprep.subr.bf16.mxu0 0
          %1245 = vmatpush1.bf16.msra.mxu0 %v1104
          %1246 = vmatprep.subr.bf16.mxu0 0
          %1247 = vmatpush1.bf16.msra.mxu0 %v1109
          %1248 = vmatprep.subr.bf16.mxu0 0
          %1249 = vmatpush1.bf16.msra.mxu0 0
          %1250 = vmatprep.subr.bf16.mxu0 0
          %1251 = vmatpush1.bf16.msra.mxu0 0
          %1252 = vmatprep.subr.bf16.mxu0 0
          %1253 = vmatpush1.bf16.msra.mxu0 0
          %1254 = vmatprep.subr.bf16.mxu0 0
          %1255 = vmatpush1.bf16.msra.mxu0 0
          %1256 = vmatprep.subr.bf16.mxu0 0
          %1257 = vmatpush1.bf16.msra.mxu0 0
          %1258 = vmatprep.subr.bf16.mxu0 0
          %1259 = vmatpush1.bf16.msra.mxu0 0
          %1260 = vmatprep.subr.bf16.mxu0 0
          %1261 = vmatpush1.bf16.msra.mxu0 0
          %1262 = vmatprep.subr.bf16.mxu0 0
          %1263 = vmatpush1.bf16.msra.mxu0 0
          %1264 = vmatprep.mubr.bf16.mxu0 0
          %1265 = vmatmul.mubr.bf16.gmra.mrb[0].mxu0 %v879
          %v1266 = vpop.f32.mrb[0].mxu0
          %v1267 = vadd.f32 0.0, %v1266
          %v1268 = vpop.f32.mrb[0].mxu0
          %v1269 = vpop.f32.mrb[0].mxu0
          %v1270 = vpop.f32.mrb[0].mxu0
          %1271 = vdwg.mxu0
          %v1272 = vadd.f32 %v889, %v1185
          %v1273 = vadd.f32 %v890, %v1187
          %v1274 = vadd.f32 %v891, %v1226
          %v1275 = vadd.f32 %v892, %v1228
          %v1276 = vadd.f32 %v893, %v1267
          %v1277 = vxor.u32 %v1272, 2147483648
          %v1278 = vmul.f32 %v1277, 1.442695
          %v1279 = vpow.pop %v1278
          %v1280 = vadd.f32 %v1279, 1.0
          %v1281 = vrcp.pop %v1280
          %v1282 = vmul.f32 1.0, %v1281
          %v1283 = vxor.u32 %v1273, 2147483648
          %v1284 = vmul.f32 %v1283, 1.442695
          %v1285 = vpow.pop %v1284
          %v1286 = vadd.f32 %v1285, 1.0
          %v1287 = vrcp.pop %v1286
          %v1288 = vmul.f32 1.0, %v1287
          %v1289 = vxor.u32 %v1274, 2147483648
          %v1290 = vmul.f32 %v1289, 1.442695
          %v1291 = vpow.pop %v1290
          %v1292 = vadd.f32 %v1291, 1.0
          %v1293 = vrcp.pop %v1292
          %v1294 = vmul.f32 1.0, %v1293
          %v1295 = vtanh.pop %v1275
          %vm1296 = vcmask 23552
          %v1297 = vsel %vm1296, %v1276, -inf
          %1298 = vmax.xlane.f32.xlu0 %v1297
          %v1299 = vpop.xlane.xlu0 %1298
          %v1300 = vsub.f32 %v1276, %v1299
          %v1301 = vmul.f32 %v1300, 1.442695
          %v1302 = vpow.pop %v1301
          %v1303 = vsel %vm1296, %v1302, 0.0
          %1304 = vadd.xlane.f32.xlu0 %v1303
          %v1305 = vpop.xlane.xlu0 %1304
          %v1306 = vrcp.pop %v1305
          %v1307 = vmul.f32 %v1302, %v1306
          %vm1308 = vcmask 48152
          %v1309 = vsel %vm1308, %v1276, -inf
          %1310 = vmax.xlane.f32.xlu0 %v1309
          %v1311 = vpop.xlane.xlu0 %1310
          %v1312 = vsub.f32 %v1276, %v1311
          %v1313 = vmul.f32 %v1312, 1.442695
          %v1314 = vpow.pop %v1313
          %1316 = vrot.lane.b32.xlu0 %v1314, 125
          %v1317 = vpop.permute.xlu0 %1316
          %v1319 = vsel %vm1296, %v1317, 0.0
          %1320 = vadd.xlane.f32.xlu0 %v1319
          %v1321 = vpop.xlane.xlu0 %1320
          %v1322 = vrcp.pop %v1321
          %v1323 = vmul.f32 %v1314, %v1322
          %v1324 = vsel %vm1296, %v1307, %v1323
          %v1325 = vpack.c.bf16 %v1324, %v1324
          %v1326 = vld [vmem:[%s4] sm:$0x77]
          %v1328 = vunpack.c.l.b16 %v1326
          %v1329 = vunpack.c.h.b16 %v1326
          %v1330 = vpack.c.b16 %v1328, %v1328
          %v1331 = vpack.c.b16 %v1329, %v1329
          %vm1332 = vcmask 48128
          %v1334 = vsel %vm1332, %v1325, 0
          %vm1336 = vcmask 1042432
          %v1338 = vsel %vm1336, %v1330, 0
          %v1341 = vsel %vm1336, %v1331, 0
          %1343 = vmatprep.subr.bf16.mxu0 %v1341
          %1344 = vmatpush1.bf16.msra.mxu0 %v1338
          %1345 = vmatprep.subr.bf16.mxu0 0
          %1346 = vmatpush1.bf16.msra.mxu0 0
          %1347 = vmatprep.subr.bf16.mxu0 0
          %1348 = vmatpush1.bf16.msra.mxu0 0
          %1349 = vmatprep.subr.bf16.mxu0 0
          %1350 = vmatpush1.bf16.msra.mxu0 0
          %1351 = vmatprep.subr.bf16.mxu0 0
          %1352 = vmatpush1.bf16.msra.mxu0 0
          %1353 = vmatprep.subr.bf16.mxu0 0
          %1354 = vmatpush1.bf16.msra.mxu0 0
          %1355 = vmatprep.subr.bf16.mxu0 0
          %1356 = vmatpush1.bf16.msra.mxu0 0
          %1357 = vmatprep.subr.bf16.mxu0 0
          %1358 = vmatpush1.bf16.msra.mxu0 0
          %1359 = vmatprep.subr.bf16.mxu0 0
          %1360 = vmatpush1.bf16.msra.mxu0 0
          %1361 = vmatprep.subr.bf16.mxu0 0
          %1362 = vmatpush1.bf16.msra.mxu0 0
          %1363 = vmatprep.subr.bf16.mxu0 0
          %1364 = vmatpush1.bf16.msra.mxu0 0
          %1365 = vmatprep.subr.bf16.mxu0 0
          %1366 = vmatpush1.bf16.msra.mxu0 0
          %1367 = vmatprep.subr.bf16.mxu0 0
          %1368 = vmatpush1.bf16.msra.mxu0 0
          %1369 = vmatprep.subr.bf16.mxu0 0
          %1370 = vmatpush1.bf16.msra.mxu0 0
          %1371 = vmatprep.subr.bf16.mxu0 0
          %1372 = vmatpush1.bf16.msra.mxu0 0
          %1373 = vmatprep.subr.bf16.mxu0 0
          %1374 = vmatpush1.bf16.msra.mxu0 0
          %1375 = vmatprep.mubr.bf16.mxu0 0
          %1376 = vmatmul.mubr.bf16.gmra.mrb[0].mxu0 %v1334
          %v1377 = vpop.f32.mrb[0].mxu0
          %v1378 = vadd.f32 0.0, %v1377
          %v1379 = vpop.f32.mrb[0].mxu0
          %v1380 = vadd.f32 0.0, %v1379
          %v1381 = vpop.f32.mrb[0].mxu0
          %v1382 = vpop.f32.mrb[0].mxu0
          %1383 = vdwg.mxu0
          %v1384 = vmul.f32 %v1378, %v1380
          %v1385 = vmul.f32 %v1282, %v878
          %v1386 = vmul.f32 %v1288, %v1295
          %v1387 = vadd.f32 %v1385, %v1386
          %v1388 = vmul.f32 %v1384, %v1387
          %v1389 = vsub.f32 %v1378, %v1384
          %v1390 = vmul.f32 %v1389, %v878
          %v1391 = vadd.f32 %v1388, %v1390
          %v1392 = vsub.f32 %v1380, %v1384
          %v1393 = vmul.f32 %v1392, %v1295
          %v1394 = vadd.f32 %v1391, %v1393
          %v1395 = vtanh.pop %v1394
          %v1396 = vmul.f32 %v1294, %v1395
          %v1397 = vpack.c.bf16 %v1396, %v1396
          %1398 = vadd.xlane.f32.xlu0 %v1378
          %v1399 = vpop.xlane.xlu0 %1398
          %v1400 = vmul.f32 %v1399, 0.010416667
          %v1401 = vsub.f32 1.0, %v1400
          %p1402 = scmp.lt.s32.totalorder %s882, 0
          %s1403 = ssub.s32 0, %s882
          %s1404 = scalar_select %p1402, %s1403, %s882
          %s1405 = sand.u32 %s1404, 3
          %s1406 = ssub.s32 0, %s1405
          %s1407 = scalar_select %p1402, %s1406, %s1405
          %s1408 = smul.u32 %s1407, 8
          %s1409 = scalar_lea.vmem [#allocation4], %s1408
          %1410 = vst [vmem:[%s1409] sm:$0xff] %v1396
          %1412 = vrot.lane.b32.xlu0 %v880, 127
          %v1413 = vpop.permute.xlu0 %1412
          %v1415 = vsel %vm1296, %v1413, %v1401
          %v1416 = vpack.c.bf16 %v1415, %v1415
          %v1417 = vld [vmem:[%s5] sm:$0x3]
          %vm1418 = vcmask 31744
          %v1420 = vsel %vm1418, %v1416, 0
          %vm1422 = vcmask 1041408
          %v1424 = vsel %vm1422, %v1417, 0
          %1426 = vmatprep.subr.bf16.mxu0 0
          %1427 = vmatpush1.bf16.msra.mxu0 %v1424
          %1428 = vmatprep.subr.bf16.mxu0 0
          %1429 = vmatpush1.bf16.msra.mxu0 0
          %1430 = vmatprep.subr.bf16.mxu0 0
          %1431 = vmatpush1.bf16.msra.mxu0 0
          %1432 = vmatprep.subr.bf16.mxu0 0
          %1433 = vmatpush1.bf16.msra.mxu0 0
          %1434 = vmatprep.subr.bf16.mxu0 0
          %1435 = vmatpush1.bf16.msra.mxu0 0
          %1436 = vmatprep.subr.bf16.mxu0 0
          %1437 = vmatpush1.bf16.msra.mxu0 0
          %1438 = vmatprep.subr.bf16.mxu0 0
          %1439 = vmatpush1.bf16.msra.mxu0 0
          %1440 = vmatprep.subr.bf16.mxu0 0
          %1441 = vmatpush1.bf16.msra.mxu0 0
          %1442 = vmatprep.subr.bf16.mxu0 0
          %1443 = vmatpush1.bf16.msra.mxu0 0
          %1444 = vmatprep.subr.bf16.mxu0 0
          %1445 = vmatpush1.bf16.msra.mxu0 0
          %1446 = vmatprep.subr.bf16.mxu0 0
          %1447 = vmatpush1.bf16.msra.mxu0 0
          %1448 = vmatprep.subr.bf16.mxu0 0
          %1449 = vmatpush1.bf16.msra.mxu0 0
          %1450 = vmatprep.subr.bf16.mxu0 0
          %1451 = vmatpush1.bf16.msra.mxu0 0
          %1452 = vmatprep.subr.bf16.mxu0 0
          %1453 = vmatpush1.bf16.msra.mxu0 0
          %1454 = vmatprep.subr.bf16.mxu0 0
          %1455 = vmatpush1.bf16.msra.mxu0 0
          %1456 = vmatprep.subr.bf16.mxu0 0
          %1457 = vmatpush1.bf16.msra.mxu0 0
          %1458 = vmatprep.mubr.bf16.mxu0 0
          %1459 = vmatmul.mubr.bf16.gmra.mrb[0].mxu0 %v1420
          %v1460 = vpop.f32.mrb[0].mxu0
          %v1461 = vadd.f32 0.0, %v1460
          %v1462 = vpop.f32.mrb[0].mxu0
          %v1463 = vpop.f32.mrb[0].mxu0
          %v1464 = vpop.f32.mrb[0].mxu0
          %1465 = vdwg.mxu0
          %v1466 = vsel %vm1418, %v1461, -inf
          %1467 = vmax.xlane.f32.xlu0 %v1466
          %v1468 = vpop.xlane.xlu0 %1467
          %v1469 = vsub.f32 %v1461, %v1468
          %v1470 = vmul.f32 %v1469, 1.442695
          %v1471 = vpow.pop %v1470
          %v1472 = vsel %vm1418, %v1471, 0.0
          %1473 = vadd.xlane.f32.xlu0 %v1472
          %v1474 = vpop.xlane.xlu0 %1473
          %v1475 = vrcp.pop %v1474
          %v1476 = vmul.f32 %v1471, %v1475
          %s1477 = sadd.s32 %s882, 1
          %p1478 = scmp.lt.s32.totalorder %s1477, 0
          %s1479 = ssub.s32 0, %s1477
          %s1480 = scalar_select %p1478, %s1479, %s1477
          %s1481 = sand.u32 %s1480, 3
          %s1482 = ssub.s32 0, %s1481
          %s1483 = scalar_select %p1478, %s1482, %s1481
          %s1484 = smul.u32 %s1483, 8
          %s1485 = scalar_lea.vmem [#allocation4], %s1484
          %v1486 = vld [vmem:[%s1485] sm:$0xff]
          %1488 = vset.pattern.permute.xlu0 0
          %1489 = vperm.xlu0 %1488, %v1476
          %v1490 = vpop.permute.xlu0 %1489
          %v1492 = vmul.f32 %v1486, %v1490
          %v1493 = vpack.c.bf16 %v1492, %v1492
          %1494 = vst [vmem:[#allocation7] sm:$0xf] %v1493
          %s1495 = sadd.s32 %s882, 2
          %p1496 = scmp.lt.s32.totalorder %s1495, 0
          %s1497 = ssub.s32 0, %s1495
          %s1498 = scalar_select %p1496, %s1497, %s1495
          %s1499 = sand.u32 %s1498, 3
          %s1500 = ssub.s32 0, %s1499
          %s1501 = scalar_select %p1496, %s1500, %s1499
          %s1502 = smul.u32 %s1501, 8
          %s1503 = scalar_lea.vmem [#allocation4], %s1502
          %v1504 = vld [vmem:[%s1503] sm:$0xff]
          %1505 = vset.pattern.permute.xlu0 1
          %1506 = vperm.xlu0 %1505, %v1476
          %v1507 = vpop.permute.xlu0 %1506
          %v1509 = vmul.f32 %v1504, %v1507
          %v1510 = vpack.c.bf16 %v1509, %v1509
          %1511 = vst [vmem:[#allocation7 + $0x4] sm:$0xf] %v1510
          %s1512 = sadd.s32 %s882, 3
          %p1513 = scmp.lt.s32.totalorder %s1512, 0
          %s1514 = ssub.s32 0, %s1512
          %s1515 = scalar_select %p1513, %s1514, %s1512
          %s1516 = sand.u32 %s1515, 3
          %s1517 = ssub.s32 0, %s1516
          %s1518 = scalar_select %p1513, %s1517, %s1516
          %s1519 = smul.u32 %s1518, 8
          %s1520 = scalar_lea.vmem [#allocation4], %s1519
          %v1521 = vld [vmem:[%s1520] sm:$0xff]
          %1522 = vset.pattern.permute.xlu0 2
          %1523 = vperm.xlu0 %1522, %v1476
          %v1524 = vpop.permute.xlu0 %1523
          %v1526 = vmul.f32 %v1521, %v1524
          %v1527 = vpack.c.bf16 %v1526, %v1526
          %1528 = vst [vmem:[#allocation7 + $0x8] sm:$0xf] %v1527
          %s1529 = sadd.s32 %s882, 4
          %p1530 = scmp.lt.s32.totalorder %s1529, 0
          %s1531 = ssub.s32 0, %s1529
          %s1532 = scalar_select %p1530, %s1531, %s1529
          %s1533 = sand.u32 %s1532, 3
          %s1534 = ssub.s32 0, %s1533
          %s1535 = scalar_select %p1530, %s1534, %s1533
          %s1536 = smul.u32 %s1535, 8
          %s1537 = scalar_lea.vmem [#allocation4], %s1536
          %v1538 = vld [vmem:[%s1537] sm:$0xff]
          %1539 = vset.pattern.permute.xlu0 3
          %1540 = vperm.xlu0 %1539, %v1476
          %v1541 = vpop.permute.xlu0 %1540
          %v1543 = vmul.f32 %v1538, %v1541
          %v1544 = vpack.c.bf16 %v1543, %v1543
          %1545 = vst [vmem:[#allocation7 + $0xc] sm:$0xf] %v1544
          %v1546 = vld [vmem:[#allocation7] sm:$0xff]
          %v1547 = vld [vmem:[#allocation7 + $0x8] sm:$0xff]
          %v1548 = vld [vmem:[#allocation11] sm:$0xff]
          %v1549 = vld [vmem:[#allocation11 + $0x8] sm:$0xff]
          %v1550 = vld [vmem:[#allocation11 + $0x10] sm:$0xff]
          %v1551 = vld [vmem:[#allocation11 + $0x18] sm:$0xff]
          %v1552 = vld [vmem:[#allocation11 + $0x20] sm:$0xff]
          %v1553 = vld [vmem:[#allocation11 + $0x28] sm:$0xff]
          %v1554 = vld [vmem:[#allocation11 + $0x30] sm:$0xff]
          %v1555 = vld [vmem:[#allocation11 + $0x38] sm:$0xff]
          %v1556 = vld [vmem:[#allocation11 + $0x40] sm:$0xff]
          %v1557 = vld [vmem:[#allocation11 + $0x48] sm:$0xff]
          %v1558 = vld [vmem:[#allocation11 + $0x50] sm:$0xff]
          %v1559 = vld [vmem:[#allocation11 + $0x58] sm:$0xff]
          %v1560 = vld [vmem:[#allocation11 + $0x60] sm:$0xff]
          %v1561 = vld [vmem:[#allocation11 + $0x68] sm:$0xff]
          %v1562 = vld [vmem:[#allocation11 + $0x70] sm:$0xff]
          %v1563 = vld [vmem:[#allocation11 + $0x78] sm:$0xff]
          %v1564 = vld [vmem:[#allocation11 + $0x80] sm:$0xff]
          %v1565 = vld [vmem:[#allocation11 + $0x88] sm:$0xff]
          %v1566 = vld [vmem:[#allocation11 + $0x90] sm:$0xff]
          %v1567 = vld [vmem:[#allocation11 + $0x98] sm:$0xff]
          %v1568 = vld [vmem:[#allocation11 + $0xa0] sm:$0xff]
          %v1569 = vld [vmem:[#allocation11 + $0xa8] sm:$0xff]
          %v1570 = vld [vmem:[#allocation11 + $0xb0] sm:$0xff]
          %v1571 = vld [vmem:[#allocation11 + $0xb8] sm:$0xff]
          %v1572 = vld [vmem:[#allocation11 + $0xc0] sm:$0xff]
          %v1573 = vld [vmem:[#allocation11 + $0xc8] sm:$0xff]
          %v1574 = vld [vmem:[#allocation11 + $0xd0] sm:$0xff]
          %v1575 = vld [vmem:[#allocation11 + $0xd8] sm:$0xff]
          %v1576 = vld [vmem:[#allocation11 + $0xe0] sm:$0xff]
          %v1577 = vld [vmem:[#allocation11 + $0xe8] sm:$0xff]
          %v1578 = vld [vmem:[#allocation11 + $0xf0] sm:$0xff]
          %v1579 = vld [vmem:[#allocation11 + $0xf8] sm:$0xff]
          %v1580 = vld [vmem:[#allocation11 + $0x100] sm:$0xff]
          %v1581 = vld [vmem:[#allocation11 + $0x108] sm:$0xff]
          %v1582 = vld [vmem:[#allocation11 + $0x110] sm:$0xff]
          %v1583 = vld [vmem:[#allocation11 + $0x118] sm:$0xff]
          %v1584 = vld [vmem:[#allocation11 + $0x120] sm:$0xff]
          %v1585 = vld [vmem:[#allocation11 + $0x128] sm:$0xff]
          %v1586 = vld [vmem:[#allocation11 + $0x130] sm:$0xff]
          %v1587 = vld [vmem:[#allocation11 + $0x138] sm:$0xff]
          %v1588 = vld [vmem:[#allocation11 + $0x140] sm:$0xff]
          %v1589 = vld [vmem:[#allocation11 + $0x148] sm:$0xff]
          %v1590 = vld [vmem:[#allocation11 + $0x150] sm:$0xff]
          %v1591 = vld [vmem:[#allocation11 + $0x158] sm:$0xff]
          %v1592 = vld [vmem:[#allocation11 + $0x160] sm:$0xff]
          %v1593 = vld [vmem:[#allocation11 + $0x168] sm:$0xff]
          %v1594 = vld [vmem:[#allocation11 + $0x170] sm:$0xff]
          %v1595 = vld [vmem:[#allocation11 + $0x178] sm:$0xff]
          %v1596 = vld [vmem:[#allocation11 + $0x180] sm:$0xff]
          %v1597 = vld [vmem:[#allocation11 + $0x188] sm:$0xff]
          %v1598 = vld [vmem:[#allocation11 + $0x190] sm:$0xff]
          %v1599 = vld [vmem:[#allocation11 + $0x198] sm:$0xff]
          %v1600 = vld [vmem:[#allocation11 + $0x1a0] sm:$0xff]
          %v1601 = vld [vmem:[#allocation11 + $0x1a8] sm:$0xff]
          %v1602 = vld [vmem:[#allocation11 + $0x1b0] sm:$0xff]
          %v1603 = vld [vmem:[#allocation11 + $0x1b8] sm:$0xff]
          %v1604 = vld [vmem:[#allocation11 + $0x1c0] sm:$0xff]
          %v1605 = vld [vmem:[#allocation11 + $0x1c8] sm:$0xff]
          %v1606 = vld [vmem:[#allocation11 + $0x1d0] sm:$0xff]
          %v1607 = vld [vmem:[#allocation11 + $0x1d8] sm:$0xff]
          %v1608 = vld [vmem:[#allocation11 + $0x1e0] sm:$0xff]
          %v1609 = vld [vmem:[#allocation11 + $0x1e8] sm:$0xff]
          %v1610 = vld [vmem:[#allocation11 + $0x1f0] sm:$0xff]
          %v1611 = vld [vmem:[#allocation11 + $0x1f8] sm:$0xff]
          %v1614 = vunpack.c.l.b16 %v1546
          %v1615 = vunpack.c.h.b16 %v1546
          %v1616 = vunpack.c.l.b16 %v1547
          %v1617 = vunpack.c.h.b16 %v1547
          %v1618 = vpack.c.b16 %v1614, %v1614
          %v1619 = vpack.c.b16 %v1615, %v1615
          %v1620 = vpack.c.b16 %v1616, %v1616
          %v1621 = vpack.c.b16 %v1617, %v1617
          %v1690 = vunpack.c.l.b16 %v1548
          %v1691 = vunpack.c.h.b16 %v1548
          %v1692 = vunpack.c.l.b16 %v1549
          %v1693 = vunpack.c.h.b16 %v1549
          %v1694 = vunpack.c.l.b16 %v1550
          %v1695 = vunpack.c.h.b16 %v1550
          %v1696 = vunpack.c.l.b16 %v1551
          %v1697 = vunpack.c.h.b16 %v1551
          %v1698 = vunpack.c.l.b16 %v1552
          %v1699 = vunpack.c.h.b16 %v1552
          %v1700 = vunpack.c.l.b16 %v1553
          %v1701 = vunpack.c.h.b16 %v1553
          %v1702 = vunpack.c.l.b16 %v1554
          %v1703 = vunpack.c.h.b16 %v1554
          %v1704 = vunpack.c.l.b16 %v1555
          %v1705 = vunpack.c.h.b16 %v1555
          %v1706 = vunpack.c.l.b16 %v1556
          %v1707 = vunpack.c.h.b16 %v1556
          %v1708 = vunpack.c.l.b16 %v1557
          %v1709 = vunpack.c.h.b16 %v1557
          %v1710 = vunpack.c.l.b16 %v1558
          %v1711 = vunpack.c.h.b16 %v1558
          %v1712 = vunpack.c.l.b16 %v1559
          %v1713 = vunpack.c.h.b16 %v1559
          %v1714 = vunpack.c.l.b16 %v1560
          %v1715 = vunpack.c.h.b16 %v1560
          %v1716 = vunpack.c.l.b16 %v1561
          %v1717 = vunpack.c.h.b16 %v1561
          %v1718 = vunpack.c.l.b16 %v1562
          %v1719 = vunpack.c.h.b16 %v1562
          %v1720 = vunpack.c.l.b16 %v1563
          %v1721 = vunpack.c.h.b16 %v1563
          %v1722 = vunpack.c.l.b16 %v1564
          %v1723 = vunpack.c.h.b16 %v1564
          %v1724 = vunpack.c.l.b16 %v1565
          %v1725 = vunpack.c.h.b16 %v1565
          %v1726 = vunpack.c.l.b16 %v1566
          %v1727 = vunpack.c.h.b16 %v1566
          %v1728 = vunpack.c.l.b16 %v1567
          %v1729 = vunpack.c.h.b16 %v1567
          %v1730 = vunpack.c.l.b16 %v1568
          %v1731 = vunpack.c.h.b16 %v1568
          %v1732 = vunpack.c.l.b16 %v1569
          %v1733 = vunpack.c.h.b16 %v1569
          %v1734 = vunpack.c.l.b16 %v1570
          %v1735 = vunpack.c.h.b16 %v1570
          %v1736 = vunpack.c.l.b16 %v1571
          %v1737 = vunpack.c.h.b16 %v1571
          %v1738 = vunpack.c.l.b16 %v1572
          %v1739 = vunpack.c.h.b16 %v1572
          %v1740 = vunpack.c.l.b16 %v1573
          %v1741 = vunpack.c.h.b16 %v1573
          %v1742 = vunpack.c.l.b16 %v1574
          %v1743 = vunpack.c.h.b16 %v1574
          %v1744 = vunpack.c.l.b16 %v1575
          %v1745 = vunpack.c.h.b16 %v1575
          %v1746 = vunpack.c.l.b16 %v1576
          %v1747 = vunpack.c.h.b16 %v1576
          %v1748 = vunpack.c.l.b16 %v1577
          %v1749 = vunpack.c.h.b16 %v1577
          %v1750 = vunpack.c.l.b16 %v1578
          %v1751 = vunpack.c.h.b16 %v1578
          %v1752 = vunpack.c.l.b16 %v1579
          %v1753 = vunpack.c.h.b16 %v1579
          %v1754 = vunpack.c.l.b16 %v1580
          %v1755 = vunpack.c.h.b16 %v1580
          %v1756 = vunpack.c.l.b16 %v1581
          %v1757 = vunpack.c.h.b16 %v1581
          %v1758 = vunpack.c.l.b16 %v1582
          %v1759 = vunpack.c.h.b16 %v1582
          %v1760 = vunpack.c.l.b16 %v1583
          %v1761 = vunpack.c.h.b16 %v1583
          %v1762 = vunpack.c.l.b16 %v1584
          %v1763 = vunpack.c.h.b16 %v1584
          %v1764 = vunpack.c.l.b16 %v1585
          %v1765 = vunpack.c.h.b16 %v1585
          %v1766 = vunpack.c.l.b16 %v1586
          %v1767 = vunpack.c.h.b16 %v1586
          %v1768 = vunpack.c.l.b16 %v1587
          %v1769 = vunpack.c.h.b16 %v1587
          %v1770 = vunpack.c.l.b16 %v1588
          %v1771 = vunpack.c.h.b16 %v1588
          %v1772 = vunpack.c.l.b16 %v1589
          %v1773 = vunpack.c.h.b16 %v1589
          %v1774 = vunpack.c.l.b16 %v1590
          %v1775 = vunpack.c.h.b16 %v1590
          %v1776 = vunpack.c.l.b16 %v1591
          %v1777 = vunpack.c.h.b16 %v1591
          %v1778 = vunpack.c.l.b16 %v1592
          %v1779 = vunpack.c.h.b16 %v1592
          %v1780 = vunpack.c.l.b16 %v1593
          %v1781 = vunpack.c.h.b16 %v1593
          %v1782 = vunpack.c.l.b16 %v1594
          %v1783 = vunpack.c.h.b16 %v1594
          %v1784 = vunpack.c.l.b16 %v1595
          %v1785 = vunpack.c.h.b16 %v1595
          %v1786 = vunpack.c.l.b16 %v1596
          %v1787 = vunpack.c.h.b16 %v1596
          %v1788 = vunpack.c.l.b16 %v1597
          %v1789 = vunpack.c.h.b16 %v1597
          %v1790 = vunpack.c.l.b16 %v1598
          %v1791 = vunpack.c.h.b16 %v1598
          %v1792 = vunpack.c.l.b16 %v1599
          %v1793 = vunpack.c.h.b16 %v1599
          %v1794 = vunpack.c.l.b16 %v1600
          %v1795 = vunpack.c.h.b16 %v1600
          %v1796 = vunpack.c.l.b16 %v1601
          %v1797 = vunpack.c.h.b16 %v1601
          %v1798 = vunpack.c.l.b16 %v1602
          %v1799 = vunpack.c.h.b16 %v1602
          %v1800 = vunpack.c.l.b16 %v1603
          %v1801 = vunpack.c.h.b16 %v1603
          %v1802 = vunpack.c.l.b16 %v1604
          %v1803 = vunpack.c.h.b16 %v1604
          %v1804 = vunpack.c.l.b16 %v1605
          %v1805 = vunpack.c.h.b16 %v1605
          %v1806 = vunpack.c.l.b16 %v1606
          %v1807 = vunpack.c.h.b16 %v1606
          %v1808 = vunpack.c.l.b16 %v1607
          %v1809 = vunpack.c.h.b16 %v1607
          %v1810 = vunpack.c.l.b16 %v1608
          %v1811 = vunpack.c.h.b16 %v1608
          %v1812 = vunpack.c.l.b16 %v1609
          %v1813 = vunpack.c.h.b16 %v1609
          %v1814 = vunpack.c.l.b16 %v1610
          %v1815 = vunpack.c.h.b16 %v1610
          %v1816 = vunpack.c.l.b16 %v1611
          %v1817 = vunpack.c.h.b16 %v1611
          %v1818 = vpack.c.b16 %v1692, %v1690
          %v1819 = vpack.c.b16 %v1693, %v1691
          %v1820 = vpack.c.b16 %v1696, %v1694
          %v1821 = vpack.c.b16 %v1697, %v1695
          %v1822 = vpack.c.b16 %v1700, %v1698
          %v1823 = vpack.c.b16 %v1701, %v1699
          %v1824 = vpack.c.b16 %v1704, %v1702
          %v1825 = vpack.c.b16 %v1705, %v1703
          %v1826 = vpack.c.b16 %v1708, %v1706
          %v1827 = vpack.c.b16 %v1709, %v1707
          %v1828 = vpack.c.b16 %v1712, %v1710
          %v1829 = vpack.c.b16 %v1713, %v1711
          %v1830 = vpack.c.b16 %v1716, %v1714
          %v1831 = vpack.c.b16 %v1717, %v1715
          %v1832 = vpack.c.b16 %v1720, %v1718
          %v1833 = vpack.c.b16 %v1721, %v1719
          %v1834 = vpack.c.b16 %v1724, %v1722
          %v1835 = vpack.c.b16 %v1725, %v1723
          %v1836 = vpack.c.b16 %v1728, %v1726
          %v1837 = vpack.c.b16 %v1729, %v1727
          %v1838 = vpack.c.b16 %v1732, %v1730
          %v1839 = vpack.c.b16 %v1733, %v1731
          %v1840 = vpack.c.b16 %v1736, %v1734
          %v1841 = vpack.c.b16 %v1737, %v1735
          %v1842 = vpack.c.b16 %v1740, %v1738
          %v1843 = vpack.c.b16 %v1741, %v1739
          %v1844 = vpack.c.b16 %v1744, %v1742
          %v1845 = vpack.c.b16 %v1745, %v1743
          %v1846 = vpack.c.b16 %v1748, %v1746
          %v1847 = vpack.c.b16 %v1749, %v1747
          %v1848 = vpack.c.b16 %v1752, %v1750
          %v1849 = vpack.c.b16 %v1753, %v1751
          %v1850 = vpack.c.b16 %v1756, %v1754
          %v1851 = vpack.c.b16 %v1757, %v1755
          %v1852 = vpack.c.b16 %v1760, %v1758
          %v1853 = vpack.c.b16 %v1761, %v1759
          %v1854 = vpack.c.b16 %v1764, %v1762
          %v1855 = vpack.c.b16 %v1765, %v1763
          %v1856 = vpack.c.b16 %v1768, %v1766
          %v1857 = vpack.c.b16 %v1769, %v1767
          %v1858 = vpack.c.b16 %v1772, %v1770
          %v1859 = vpack.c.b16 %v1773, %v1771
          %v1860 = vpack.c.b16 %v1776, %v1774
          %v1861 = vpack.c.b16 %v1777, %v1775
          %v1862 = vpack.c.b16 %v1780, %v1778
          %v1863 = vpack.c.b16 %v1781, %v1779
          %v1864 = vpack.c.b16 %v1784, %v1782
          %v1865 = vpack.c.b16 %v1785, %v1783
          %v1866 = vpack.c.b16 %v1788, %v1786
          %v1867 = vpack.c.b16 %v1789, %v1787
          %v1868 = vpack.c.b16 %v1792, %v1790
          %v1869 = vpack.c.b16 %v1793, %v1791
          %v1870 = vpack.c.b16 %v1796, %v1794
          %v1871 = vpack.c.b16 %v1797, %v1795
          %v1872 = vpack.c.b16 %v1800, %v1798
          %v1873 = vpack.c.b16 %v1801, %v1799
          %v1874 = vpack.c.b16 %v1804, %v1802
          %v1875 = vpack.c.b16 %v1805, %v1803
          %v1876 = vpack.c.b16 %v1808, %v1806
          %v1877 = vpack.c.b16 %v1809, %v1807
          %v1878 = vpack.c.b16 %v1812, %v1810
          %v1879 = vpack.c.b16 %v1813, %v1811
          %v1880 = vpack.c.b16 %v1816, %v1814
          %v1881 = vpack.c.b16 %v1817, %v1815
          %1946 = vmatprep.subr.bf16.mxu0 %v1819
          %1947 = vmatpush1.bf16.msra.mxu0 %v1818
          %1948 = vmatprep.subr.bf16.mxu0 %v1821
          %1949 = vmatpush1.bf16.msra.mxu0 %v1820
          %1950 = vmatprep.subr.bf16.mxu0 %v1823
          %1951 = vmatpush1.bf16.msra.mxu0 %v1822
          %1952 = vmatprep.subr.bf16.mxu0 %v1825
          %1953 = vmatpush1.bf16.msra.mxu0 %v1824
          %1954 = vmatprep.subr.bf16.mxu0 %v1827
          %1955 = vmatpush1.bf16.msra.mxu0 %v1826
          %1956 = vmatprep.subr.bf16.mxu0 %v1829
          %1957 = vmatpush1.bf16.msra.mxu0 %v1828
          %1958 = vmatprep.subr.bf16.mxu0 %v1831
          %1959 = vmatpush1.bf16.msra.mxu0 %v1830
          %1960 = vmatprep.subr.bf16.mxu0 %v1833
          %1961 = vmatpush1.bf16.msra.mxu0 %v1832
          %1962 = vmatprep.subr.bf16.mxu0 %v1835
          %1963 = vmatpush1.bf16.msra.mxu0 %v1834
          %1964 = vmatprep.subr.bf16.mxu0 %v1837
          %1965 = vmatpush1.bf16.msra.mxu0 %v1836
          %1966 = vmatprep.subr.bf16.mxu0 %v1839
          %1967 = vmatpush1.bf16.msra.mxu0 %v1838
          %1968 = vmatprep.subr.bf16.mxu0 %v1841
          %1969 = vmatpush1.bf16.msra.mxu0 %v1840
          %1970 = vmatprep.subr.bf16.mxu0 %v1843
          %1971 = vmatpush1.bf16.msra.mxu0 %v1842
          %1972 = vmatprep.subr.bf16.mxu0 %v1845
          %1973 = vmatpush1.bf16.msra.mxu0 %v1844
          %1974 = vmatprep.subr.bf16.mxu0 %v1847
          %1975 = vmatpush1.bf16.msra.mxu0 %v1846
          %1976 = vmatprep.subr.bf16.mxu0 %v1849
          %1977 = vmatpush1.bf16.msra.mxu0 %v1848
          %1978 = vmatprep.mubr.bf16.mxu0 %v1619
          %1979 = vmatmul.mubr.bf16.gmra.mrb[0].mxu0 %v1618
          %v1980 = vpop.f32.mrb[0].mxu0
          %v1981 = vadd.f32 0.0, %v1980
          %v1982 = vpop.f32.mrb[0].mxu0
          %v1983 = vadd.f32 0.0, %v1982
          %v1984 = vpop.f32.mrb[0].mxu0
          %v1985 = vpop.f32.mrb[0].mxu0
          %1986 = vdwg.mxu0
          %1987 = vmatprep.subr.bf16.mxu0 %v1851
          %1988 = vmatpush1.bf16.msra.mxu0 %v1850
          %1989 = vmatprep.subr.bf16.mxu0 %v1853
          %1990 = vmatpush1.bf16.msra.mxu0 %v1852
          %1991 = vmatprep.subr.bf16.mxu0 %v1855
          %1992 = vmatpush1.bf16.msra.mxu0 %v1854
          %1993 = vmatprep.subr.bf16.mxu0 %v1857
          %1994 = vmatpush1.bf16.msra.mxu0 %v1856
          %1995 = vmatprep.subr.bf16.mxu0 %v1859
          %1996 = vmatpush1.bf16.msra.mxu0 %v1858
          %1997 = vmatprep.subr.bf16.mxu0 %v1861
          %1998 = vmatpush1.bf16.msra.mxu0 %v1860
          %1999 = vmatprep.subr.bf16.mxu0 %v1863
          %2000 = vmatpush1.bf16.msra.mxu0 %v1862
          %2001 = vmatprep.subr.bf16.mxu0 %v1865
          %2002 = vmatpush1.bf16.msra.mxu0 %v1864
          %2003 = vmatprep.subr.bf16.mxu0 %v1867
          %2004 = vmatpush1.bf16.msra.mxu0 %v1866
          %2005 = vmatprep.subr.bf16.mxu0 %v1869
          %2006 = vmatpush1.bf16.msra.mxu0 %v1868
          %2007 = vmatprep.subr.bf16.mxu0 %v1871
          %2008 = vmatpush1.bf16.msra.mxu0 %v1870
          %2009 = vmatprep.subr.bf16.mxu0 %v1873
          %2010 = vmatpush1.bf16.msra.mxu0 %v1872
          %2011 = vmatprep.subr.bf16.mxu0 %v1875
          %2012 = vmatpush1.bf16.msra.mxu0 %v1874
          %2013 = vmatprep.subr.bf16.mxu0 %v1877
          %2014 = vmatpush1.bf16.msra.mxu0 %v1876
          %2015 = vmatprep.subr.bf16.mxu0 %v1879
          %2016 = vmatpush1.bf16.msra.mxu0 %v1878
          %2017 = vmatprep.subr.bf16.mxu0 %v1881
          %2018 = vmatpush1.bf16.msra.mxu0 %v1880
          %2019 = vmatprep.mubr.bf16.mxu0 %v1621
          %2020 = vmatmul.mubr.bf16.gmra.mrb[0].mxu0 %v1620
          %v2021 = vpop.f32.mrb[0].mxu0
          %v2022 = vadd.f32 %v1981, %v2021
          %v2023 = vpop.f32.mrb[0].mxu0
          %v2024 = vadd.f32 %v1983, %v2023
          %v2025 = vpop.f32.mrb[0].mxu0
          %v2026 = vpop.f32.mrb[0].mxu0
          %2027 = vdwg.mxu0
          %v2028 = vld [vmem:[%s10] sm:$0x1]
          %v2030 = vlaneseq
          %v2031 = vshrl.u32 %v2030, 7
          %v2032 = vsub.s32 0, %v2031
          %v2033 = vrot.slane %v2028, %v2032
          %v2035 = vadd.f32 %v2022, %v2033
          %v2036 = vld [vmem:[%s7] sm:$0x1]
          %v2038 = vlaneseq
          %v2039 = vshrl.u32 %v2038, 7
          %v2040 = vsub.s32 0, %v2039
          %v2041 = vrot.slane %v2036, %v2040
          %v2043 = vadd.f32 %v2024, %v2041
          %v2044 = vmax.f32 %v2043, 0.0
          %v2045 = vpack.c.bf16 %v2044, %v2044
          %v2046 = vld [vmem:[%s8] sm:$0xf]
          %v2047 = vld [vmem:[%s8 + $0x4] sm:$0xf]
          %v2048 = vld [vmem:[%s8 + $0x8] sm:$0xf]
          %v2049 = vld [vmem:[%s8 + $0xc] sm:$0xf]
          %v2050 = vld [vmem:[%s8 + $0x10] sm:$0xf]
          %v2051 = vld [vmem:[%s8 + $0x14] sm:$0xf]
          %v2052 = vld [vmem:[%s8 + $0x18] sm:$0xf]
          %v2053 = vld [vmem:[%s8 + $0x1c] sm:$0xf]
          %v2054 = vld [vmem:[%s8 + $0x20] sm:$0xf]
          %v2055 = vld [vmem:[%s8 + $0x24] sm:$0xf]
          %v2056 = vld [vmem:[%s8 + $0x28] sm:$0xf]
          %v2057 = vld [vmem:[%s8 + $0x2c] sm:$0xf]
          %v2058 = vld [vmem:[%s8 + $0x30] sm:$0xf]
          %v2059 = vld [vmem:[%s8 + $0x34] sm:$0xf]
          %v2060 = vld [vmem:[%s8 + $0x38] sm:$0xf]
          %v2061 = vld [vmem:[%s8 + $0x3c] sm:$0xf]
          %v2062 = vld [vmem:[%s9] sm:$0x1]
          %v2064 = vlaneseq
          %v2065 = vshrl.u32 %v2064, 7
          %v2066 = vsub.s32 0, %v2065
          %v2067 = vrot.slane %v2062, %v2066
          %v2085 = vunpack.c.l.b16 %v2046
          %v2086 = vunpack.c.l.b16 %v2047
          %v2087 = vunpack.c.l.b16 %v2048
          %v2088 = vunpack.c.l.b16 %v2049
          %v2089 = vunpack.c.l.b16 %v2050
          %v2090 = vunpack.c.l.b16 %v2051
          %v2091 = vunpack.c.l.b16 %v2052
          %v2092 = vunpack.c.l.b16 %v2053
          %v2093 = vunpack.c.l.b16 %v2054
          %v2094 = vunpack.c.l.b16 %v2055
          %v2095 = vunpack.c.l.b16 %v2056
          %v2096 = vunpack.c.l.b16 %v2057
          %v2097 = vunpack.c.l.b16 %v2058
          %v2098 = vunpack.c.l.b16 %v2059
          %v2099 = vunpack.c.l.b16 %v2060
          %v2100 = vunpack.c.l.b16 %v2061
          %v2101 = vpack.c.b16 %v2086, %v2085
          %v2102 = vpack.c.b16 %v2088, %v2087
          %v2103 = vpack.c.b16 %v2090, %v2089
          %v2104 = vpack.c.b16 %v2092, %v2091
          %v2105 = vpack.c.b16 %v2094, %v2093
          %v2106 = vpack.c.b16 %v2096, %v2095
          %v2107 = vpack.c.b16 %v2098, %v2097
          %v2108 = vpack.c.b16 %v2100, %v2099
          %2117 = vmatprep.subr.bf16.mxu0 0
          %2118 = vmatpush1.bf16.msra.mxu0 %v2101
          %2119 = vmatprep.subr.bf16.mxu0 0
          %2120 = vmatpush1.bf16.msra.mxu0 %v2102
          %2121 = vmatprep.subr.bf16.mxu0 0
          %2122 = vmatpush1.bf16.msra.mxu0 %v2103
          %2123 = vmatprep.subr.bf16.mxu0 0
          %2124 = vmatpush1.bf16.msra.mxu0 %v2104
          %2125 = vmatprep.subr.bf16.mxu0 0
          %2126 = vmatpush1.bf16.msra.mxu0 %v2105
          %2127 = vmatprep.subr.bf16.mxu0 0
          %2128 = vmatpush1.bf16.msra.mxu0 %v2106
          %2129 = vmatprep.subr.bf16.mxu0 0
          %2130 = vmatpush1.bf16.msra.mxu0 %v2107
          %2131 = vmatprep.subr.bf16.mxu0 0
          %2132 = vmatpush1.bf16.msra.mxu0 %v2108
          %2133 = vmatprep.subr.bf16.mxu0 0
          %2134 = vmatpush1.bf16.msra.mxu0 0
          %2135 = vmatprep.subr.bf16.mxu0 0
          %2136 = vmatpush1.bf16.msra.mxu0 0
          %2137 = vmatprep.subr.bf16.mxu0 0
          %2138 = vmatpush1.bf16.msra.mxu0 0
          %2139 = vmatprep.subr.bf16.mxu0 0
          %2140 = vmatpush1.bf16.msra.mxu0 0
          %2141 = vmatprep.subr.bf16.mxu0 0
          %2142 = vmatpush1.bf16.msra.mxu0 0
          %2143 = vmatprep.subr.bf16.mxu0 0
          %2144 = vmatpush1.bf16.msra.mxu0 0
          %2145 = vmatprep.subr.bf16.mxu0 0
          %2146 = vmatpush1.bf16.msra.mxu0 0
          %2147 = vmatprep.subr.bf16.mxu0 0
          %2148 = vmatpush1.bf16.msra.mxu0 0
          %2149 = vmatprep.mubr.bf16.mxu0 0
          %2150 = vmatmul.mubr.bf16.gmra.mrb[0].mxu0 %v2045
          %v2151 = vpop.f32.mrb[0].mxu0
          %v2152 = vadd.f32 %v2067, %v2151
          %v2153 = vpop.f32.mrb[0].mxu0
          %v2154 = vpop.f32.mrb[0].mxu0
          %v2155 = vpop.f32.mrb[0].mxu0
          %2156 = vdwg.mxu0
          %v2157 = vxor.u32 %v2152, 2147483648
          %v2158 = vmul.f32 %v2157, 1.442695
          %v2159 = vpow.pop %v2158
          %v2160 = vadd.f32 %v2159, 1.0
          %v2161 = vrcp.pop %v2160
          %v2162 = vmul.f32 1.0, %v2161
          %v2163 = vmul.f32 %v2162, %v2035
          %v2164 = vadd.f32 %v2163, %v1396
          %v2165 = vld [vmem:[%s11] sm:$0x1]
          %v2167 = vlaneseq
          %v2168 = vshrl.u32 %v2167, 7
          %v2169 = vsub.s32 0, %v2168
          %v2170 = vrot.slane %v2165, %v2169
          %v2172 = vmul.f32 %v1401, %v2170
          %v2173 = vadd.f32 %v2164, %v2172
          %s2174 = scalar_lea.vmem %s460, %s883 [#allocation13]
          %2175 = vst [vmem:[%s2174] sm:$0xff] %v2173
        $region85: #{tpu_custom_call.1} parent=67 // loop_footer
          %s877 = sadd.s32 1, %s873
        $region86: #{tpu_custom_call.1} parent=67 // loop_footer_branch
          %872 = sbr.rel target = $region82
        $region87: #{tpu_custom_call.1} parent=67 // loop_exit
          _
        %2176 = vst [vmem:[#allocation2] sm:$0xff] %v878
        %2177 = vst [vmem:[#allocation3] sm:$0xf] %v879
        %vm2178 = vcmask 31744
        %2179 = vst.msk [vmem:[#allocation5] sm:$0xff] %vm2178, %v880
        %s2180 = sand.u32 %s309, 1
        %s2181 = scalar_lea.sflag [#allocation10], %s2180
        %s2182 = sand.u32 %s309, 1
        %s2183 = smul.addr %s2182, 64
        %s2184 = scalar_lea.vmem [#allocation13], %s2183
        // Predicated region
        $region88: #{tpu_custom_call.1} parent=67 // pred_check
          %p2185 = pneg %p319
        $region89: #{tpu_custom_call.1} parent=67 // pred_check_branch
          %2187 = sbr.rel (%p2185) target = $region91
        $region90: #{tpu_custom_call.1} parent=67 // pred_region
          %s2188 = smul.u32 8, %s33
          %s2190 = ssub.s32 1024, 1024
          %2191 = vsyncadd %s2181, %s2190
          %s2192 = smul.addr %s2188, 2
          %s2193 = sadd.s32 %s32, %s2192
          %s2194 = smul.addr %s2193, 128
          %s2195 = scalar_lea.hbm %s12, %s2194
          %s2196 = sshll.u32 %s2184, 4
          %s2197 = int_to_ptr.vmem [resolvable:$true] %s2196
          %2202 = dma.vmem_to_hbm [thread:$0]  %s2197, 1024, %s2195, %s2181, 128, 256, 8
        $region91: #{tpu_custom_call.1} parent=67 // pred_fallthru
          _
      $region68: #{tpu_custom_call.1} parent=5 // pred_fallthru
        _
      %p2203 = scmp.le.s32.totalorder 2, %s23
      // Predicated region
      $region92: #{tpu_custom_call.1} parent=5 // pred_check
        %p2204 = pneg %p2203
      $region93: #{tpu_custom_call.1} parent=5 // pred_check_branch
        %2206 = sbr.rel (%p2204) target = $region95
      $region94: #{tpu_custom_call.1} parent=5 // pred_region
        %s2207 = ssub.s32 %s23, 2
        // Predicated region
        $region96: #{tpu_custom_call.1} parent=94 // pred_check
          %p2208 = pneg %p325
        $region97: #{tpu_custom_call.1} parent=94 // pred_check_branch
          %2210 = sbr.rel (%p2208) target = $region99
        $region98: #{tpu_custom_call.1} parent=94 // pred_region
          %s2211 = sand.u32 %s310, 1
          %s2212 = scalar_lea.sflag [#allocation10], %s2211
          %s2213 = sand.u32 %s310, 1
          %s2214 = smul.addr %s2213, 64
          %s2215 = scalar_lea.vmem [#allocation13], %s2214
          %2216 = dma.done %s2212, 1024
        $region99: #{tpu_custom_call.1} parent=94 // pred_fallthru
          _
      $region95: #{tpu_custom_call.1} parent=5 // pred_fallthru
        _
    $region6: #{tpu_custom_call.1} parent=1 // loop_footer
      %s27 = sadd.s32 1, %s23
    $region7: #{tpu_custom_call.1} parent=1 // loop_footer_branch
      %22 = sbr.rel target = $region3
    $region8: #{tpu_custom_call.1} parent=1 // loop_exit
      _
    %2217 = vsyncpa [#allocation9], 1
    %s2218 = scalar_lea.sflag [#allocation9], 1
    %2219 = vsyncpa %s2218, 1
    %2220 = vsyncpa [#allocation12], 1
    %2221 = vsyncpa [#allocation10], 1
    %s2222 = scalar_lea.sflag [#allocation10], 1
    %2223 = vsyncpa %s2222, 1

</llo_original>
